<compile_context>
chip_gen: v6e
topology: v6e:2x2x1
jax: 0.10.0
libtpu: 0.0.40
codegen_flags: <defaults>
</compile_context>

<pallas_src>
import functools

import jax
import jax.numpy as jnp
from jax.experimental import pallas as pl
from jax.experimental.pallas import tpu as pltpu


# ----------------------------------------------------------------------------
# Pallas kernel: one full GATConv layer (all heads, whole graph in VMEM)
# ----------------------------------------------------------------------------
def _gat_layer_kernel(x_ref, w_ref, asrc_ref, adst_ref, bias_ref, adjb_ref,
                      out_ref, *, heads, cpf, concat, apply_elu,
                      apply_log_softmax):
    """GATConv layer.

    x_ref:    (N, F)        node features
    w_ref:    (F, H*C)      head-concatenated linear weight
    asrc_ref: (H, H*C)      block-diagonal source attention matrix
    adst_ref: (H*C, H)      block-diagonal target attention matrix
    bias_ref: (1, H*C) if concat else (1, C)
    adjb_ref: (N, N)        additive mask, 0 where edge j->i, -1e30 otherwise
    out_ref:  (N, H*C) if concat else (N, C)
    """
    x_bf16 = x_ref[...].astype(jnp.bfloat16)
    w_bf16 = w_ref[...].astype(jnp.bfloat16)

    # Single lane-dense projection on the MXU: h_all[n, h*C+c].
    h_all = jnp.dot(x_bf16, w_bf16,
                    preferred_element_type=jnp.float32)              # (N, H*C)

    # Per-node attention logits for all heads at once (MXU, no transposes):
    #   a_dst[n, h] = sum_c h_all[n, h*C+c] * att_dst[h, c]   (column orient.)
    #   a_src[h, n] = sum_c h_all[n, h*C+c] * att_src[h, c]   (row orientation)
    a_dst_nh = jnp.dot(h_all, adst_ref[...],
                       preferred_element_type=jnp.float32)            # (N, H)
    a_src_hn = jax.lax.dot_general(
        asrc_ref[...], h_all,
        dimension_numbers=(((1,), (1,)), ((), ())),
        preferred_element_type=jnp.float32)                           # (H, N)

    adj_bias = adjb_ref[...]                                          # (N, N)

    head_outs = []
    for hd in range(heads):                                           # unrolled
        # e[i, j] = LeakyReLU(a_dst[i] + a_src[j], 0.2) + mask
        e = a_dst_nh[:, hd:hd + 1] + a_src_hn[hd:hd + 1, :]           # (N, N)
        e = jnp.where(e > 0, e, 0.2 * e)
        e = e + adj_bias

        # Softmax over incoming neighbours j (self-loops guarantee >=1 edge).
        m = jnp.max(e, axis=-1, keepdims=True)
        p = jnp.exp(e - m)
        denom = jnp.sum(p, axis=-1, keepdims=True)
        alpha = p * pl.reciprocal(denom, approx=True)                 # (N, N)

        # Weighted aggregation on the MXU (bf16 in, f32 accumulate).
        h_head = h_all[:, hd * cpf:(hd + 1) * cpf]                    # (N, C)
        out_h = jnp.dot(alpha.astype(jnp.bfloat16),
                        h_head.astype(jnp.bfloat16),
                        preferred_element_type=jnp.float32)           # (N, C)
        head_outs.append(out_h)

    if concat:
        out = head_outs[0] if heads == 1 else jnp.concatenate(head_outs,
                                                              axis=-1)
    else:
        out = head_outs[0]
        for t in head_outs[1:]:
            out = out + t
        if heads > 1:
            out = out * (1.0 / heads)

    # Bias (after concat / after mean, matching PyG).
    out = out + bias_ref[...]

    if apply_elu:
        # ELU(x) = x if x > 0 else exp(x) - 1
        out = jnp.where(out > 0, out, jnp.exp(jnp.minimum(out, 0.0)) - 1.0)

    if apply_log_softmax:
        mm = jnp.max(out, axis=-1, keepdims=True)
        s = out - mm
        lse = jnp.log(jnp.sum(jnp.exp(s), axis=-1, keepdims=True))
        out = s - lse

    out_ref[...] = out


# ----------------------------------------------------------------------------
# Wrappers
# ----------------------------------------------------------------------------
def _block_diag_att(att):
    """att: (H, 1, C) -> (H, H*C) with A[h, h*C+c] = att[h, 0, c], else 0."""
    H, _, C = att.shape
    a = att.reshape(H, C)
    eye = jnp.eye(H, dtype=a.dtype)
    return (eye[:, :, None] * a[None, :, :]).reshape(H, H * C)


def gat_conv(x, w, att_src, att_dst, bias, adj_bias, *, concat,
             apply_elu=False, apply_log_softmax=False):
    """One GATConv layer (single pallas_call, all heads fused).

    x:        (N, F)
    w:        (H, F, C)
    att_src:  (H, 1, C)
    att_dst:  (H, 1, C)
    bias:     (H, 1, C) if concat else (1, 1, C)
    adj_bias: (N, N)  additive mask (0 where edge j->i incl. self-loops)

    Returns (N, H*C) if concat else (N, C) (mean over heads).
    """
    N, F = x.shape
    H, _, C = w.shape
    out_dim = H * C if concat else C

    # Parameter plumbing (tiny, host/XLA side).
    w_all = jnp.transpose(w, (1, 0, 2)).reshape(F, H * C)      # (F, H*C)
    a_src_mat = _block_diag_att(att_src)                        # (H, H*C)
    a_dst_mat = _block_diag_att(att_dst).T                      # (H*C, H)
    bias_all = bias.reshape(1, H * C) if concat else bias.reshape(1, C)

    kernel = functools.partial(
        _gat_layer_kernel, heads=H, cpf=C, concat=concat,
        apply_elu=apply_elu, apply_log_softmax=apply_log_softmax)

    flops = (2 * N * F * H * C            # projection
             + 4 * N * H * C * H          # attention logits
             + 2 * H * N * N * C          # alpha @ h
             + 6 * H * N * N)             # softmax / mask adds
    transcendentals = H * N * N + N * out_dim
    bytes_accessed = 4 * (x.size + w_all.size + a_src_mat.size
                          + a_dst_mat.size + bias_all.size + adj_bias.size
                          + N * out_dim)
    cost = pl.CostEstimate(flops=flops, transcendentals=transcendentals,
                           bytes_accessed=bytes_accessed)

    return pl.pallas_call(
        kernel,
        out_shape=jax.ShapeDtypeStruct((N, out_dim), jnp.float32),
        in_specs=[
            pl.BlockSpec((N, F), lambda: (0, 0)),          # x
            pl.BlockSpec((F, H * C), lambda: (0, 0)),      # W_all
            pl.BlockSpec((H, H * C), lambda: (0, 0)),      # att_src (block-diag)
            pl.BlockSpec((H * C, H), lambda: (0, 0)),      # att_dst (block-diag)
            pl.BlockSpec((1, out_dim), lambda: (0, 0)),    # bias
            pl.BlockSpec((N, N), lambda: (0, 0)),          # adjacency bias
        ],
        out_specs=pl.BlockSpec((N, out_dim), lambda: (0, 0)),
        cost_estimate=cost,
    )(x, w_all, a_src_mat, a_dst_mat, bias_all, adj_bias)


def build_adj_bias(edge_index, num_nodes):
    """Additive adjacency mask with self-loops.

    adj_bias[i, j] = 0 iff there is an edge j -> i (or i == j), else -1e30.
    """
    src, tar = edge_index[0], edge_index[1]
    adj = jnp.zeros((num_nodes, num_nodes), jnp.float32).at[tar, src].set(1.0)
    adj = jnp.maximum(adj, jnp.eye(num_nodes, dtype=jnp.float32))
    return jnp.where(adj > 0, 0.0, -1e30).astype(jnp.float32)


def gat_forward(x, edge_index, params):
    """Two-layer GAT forward (eval mode: dropouts are identity)."""
    N = x.shape[0]
    adj_bias = build_adj_bias(edge_index, N)

    # conv1: multi-head, concat, ELU fused into the kernel epilogue.
    x1 = gat_conv(x, params["w1"], params["asrc1"], params["adst1"],
                  params["b1"], adj_bias, concat=True, apply_elu=True)

    # conv2: single head, concat=False (mean over heads), log_softmax fused.
    x2 = gat_conv(x1, params["w2"], params["asrc2"], params["adst2"],
                  params["b2"], adj_bias, concat=False,
                  apply_log_softmax=True)
    return x2


# ----------------------------------------------------------------------------
# Main
# ----------------------------------------------------------------------------
if __name__ == "__main__":
    num_nodes = 32
    num_edges = 64
    num_features = 16
    hidden = 32
    heads = 4
    num_classes = 8
    c1 = hidden // heads  # out_channels of conv1 per head

    key = jax.random.PRNGKey(0)
    keys = jax.random.split(key, 12)

    # Node features and random graph.
    x = jax.random.normal(keys[0], (num_nodes, num_features), jnp.float32)
    src = jax.random.randint(keys[1], (num_edges,), 0, num_nodes, jnp.int32)
    tar = jax.random.randint(keys[2], (num_edges,), 0, num_nodes, jnp.int32)
    edge_index = jnp.stack([src, tar], axis=0)                  # (2, E)

    # Deterministic synthetic parameters (shapes follow GATConv.__init__).
    params = {
        # conv1: in=num_features, out=hidden/heads per head, H=heads
        "w1":    0.1 * jax.random.normal(keys[3], (heads, num_features, c1), jnp.float32),
        "asrc1": 0.1 * jax.random.normal(keys[4], (heads, 1, c1), jnp.float32),
        "adst1": 0.1 * jax.random.normal(keys[5], (heads, 1, c1), jnp.float32),
        "b1":    0.1 * jax.random.normal(keys[6], (heads, 1, c1), jnp.float32),
        # conv2: in=hidden, out=num_classes, H=1, concat=False
        "w2":    0.1 * jax.random.normal(keys[7], (1, hidden, num_classes), jnp.float32),
        "asrc2": 0.1 * jax.random.normal(keys[8], (1, 1, num_classes), jnp.float32),
        "adst2": 0.1 * jax.random.normal(keys[9], (1, 1, num_classes), jnp.float32),
        "b2":    0.1 * jax.random.normal(keys[10], (1, 1, num_classes), jnp.float32),
    }

    out = jax.jit(gat_forward)(x, edge_index, params)
    jax.block_until_ready(out)

    assert out.shape == (num_nodes, num_classes)
    # log_softmax rows must (approximately) sum to 1 in prob space.
    assert jnp.allclose(jnp.sum(jnp.exp(out), axis=1), 1.0, atol=1e-4)

    print("KERNEL_OK")
</pallas_src>

<mosaic_0001>
module attributes {stable_mosaic.version = 11 : i64} {
  func.func @_gat_layer_kernel(%arg0: memref<32x32xf32, #tpu.memory_space<vmem>>, %arg1: memref<32x8xf32, #tpu.memory_space<vmem>>, %arg2: memref<1x8xf32, #tpu.memory_space<vmem>>, %arg3: memref<8x1xf32, #tpu.memory_space<vmem>>, %arg4: memref<1x8xf32, #tpu.memory_space<vmem>>, %arg5: memref<32x32xf32, #tpu.memory_space<vmem>>, %arg6: memref<32x8xf32, #tpu.memory_space<vmem>>) attributes {dimension_semantics = [], scalar_prefetch = 0 : i64, scratch_operands = 0 : i64, tpu.core_type = #tpu.core_type<tc>} {
    %c0 = arith.constant 0 : index
    %c0_0 = arith.constant 0 : index
    %0 = vector.load %arg0[%c0, %c0_0] : memref<32x32xf32, #tpu.memory_space<vmem>>, vector<32x32xf32>
    %1 = arith.truncf %0 : vector<32x32xf32> to vector<32x32xbf16>
    %c0_1 = arith.constant 0 : index
    %c0_2 = arith.constant 0 : index
    %2 = vector.load %arg1[%c0_1, %c0_2] : memref<32x8xf32, #tpu.memory_space<vmem>>, vector<32x8xf32>
    %3 = arith.truncf %2 : vector<32x8xf32> to vector<32x8xbf16>
    %cst = arith.constant dense<0.000000e+00> : vector<32x8xf32>
    %4 = tpu.matmul %1, %3, %cst {dimension_numbers = #tpu.dot_dimension_numbers<[1], [0], [0], [1], [0, 0, 1, 1], [], []>} : vector<32x32xbf16>, vector<32x8xbf16>, vector<32x8xf32> -> vector<32x8xf32>
    %c0_3 = arith.constant 0 : index
    %c0_4 = arith.constant 0 : index
    %5 = vector.load %arg3[%c0_3, %c0_4] : memref<8x1xf32, #tpu.memory_space<vmem>>, vector<8x1xf32>
    %cst_5 = arith.constant dense<0.000000e+00> : vector<32x1xf32>
    %6 = tpu.matmul %4, %5, %cst_5 {dimension_numbers = #tpu.dot_dimension_numbers<[1], [0], [0], [1], [0, 0, 1, 1], [], []>} : vector<32x8xf32>, vector<8x1xf32>, vector<32x1xf32> -> vector<32x1xf32>
    %c0_6 = arith.constant 0 : index
    %c0_7 = arith.constant 0 : index
    %7 = vector.load %arg2[%c0_6, %c0_7] : memref<1x8xf32, #tpu.memory_space<vmem>>, vector<1x8xf32>
    %cst_8 = arith.constant dense<0.000000e+00> : vector<1x32xf32>
    %8 = tpu.matmul %7, %4, %cst_8 {dimension_numbers = #tpu.dot_dimension_numbers<[1], [1], [0], [0], [0, 0, 1, 0], [], []>} : vector<1x8xf32>, vector<32x8xf32>, vector<1x32xf32> -> vector<1x32xf32>
    %c0_9 = arith.constant 0 : index
    %c0_10 = arith.constant 0 : index
    %9 = vector.load %arg5[%c0_9, %c0_10] : memref<32x32xf32, #tpu.memory_space<vmem>>, vector<32x32xf32>
    %10 = vector.broadcast %6 : vector<32x1xf32> to vector<32x32xf32>
    %11 = vector.broadcast %8 : vector<1x32xf32> to vector<32x32xf32>
    %12 = arith.addf %10, %11 : vector<32x32xf32>
    %cst_11 = arith.constant 0.000000e+00 : f32
    %13 = vector.broadcast %cst_11 : f32 to vector<32x32xf32>
    %14 = arith.cmpf ogt, %12, %13 : vector<32x32xf32>
    %cst_12 = arith.constant 2.000000e-01 : f32
    %15 = vector.broadcast %cst_12 : f32 to vector<32x32xf32>
    %16 = arith.mulf %15, %12 : vector<32x32xf32>
    %17 = arith.select %14, %12, %16 : vector<32x32xi1>, vector<32x32xf32>
    %18 = arith.addf %17, %9 : vector<32x32xf32>
    %cst_13 = arith.constant dense<0xFF800000> : vector<32xf32>
    %19 = vector.multi_reduction <maximumf>, %18, %cst_13 [1] : vector<32x32xf32> to vector<32xf32>
    %20 = vector.shape_cast %19 : vector<32xf32> to vector<32x1xf32>
    %21 = vector.broadcast %20 : vector<32x1xf32> to vector<32x32xf32>
    %22 = arith.subf %18, %21 : vector<32x32xf32>
    %23 = math.exp %22 : vector<32x32xf32>
    %cst_14 = arith.constant dense<0.000000e+00> : vector<32xf32>
    %24 = vector.multi_reduction <add>, %23, %cst_14 [1] : vector<32x32xf32> to vector<32xf32>
    %25 = vector.shape_cast %24 : vector<32xf32> to vector<32x1xf32>
    %26 = tpu.reciprocal %25 {approx = true} : vector<32x1xf32> -> vector<32x1xf32>
    %27 = vector.broadcast %26 : vector<32x1xf32> to vector<32x32xf32>
    %28 = arith.mulf %23, %27 : vector<32x32xf32>
    %29 = arith.truncf %28 : vector<32x32xf32> to vector<32x32xbf16>
    %30 = arith.truncf %4 : vector<32x8xf32> to vector<32x8xbf16>
    %cst_15 = arith.constant dense<0.000000e+00> : vector<32x8xf32>
    %31 = tpu.matmul %29, %30, %cst_15 {dimension_numbers = #tpu.dot_dimension_numbers<[1], [0], [0], [1], [0, 0, 1, 1], [], []>} : vector<32x32xbf16>, vector<32x8xbf16>, vector<32x8xf32> -> vector<32x8xf32>
    %c0_16 = arith.constant 0 : index
    %c0_17 = arith.constant 0 : index
    %32 = vector.load %arg4[%c0_16, %c0_17] : memref<1x8xf32, #tpu.memory_space<vmem>>, vector<1x8xf32>
    %33 = vector.broadcast %32 : vector<1x8xf32> to vector<32x8xf32>
    %34 = arith.addf %31, %33 : vector<32x8xf32>
    %cst_18 = arith.constant dense<0xFF800000> : vector<32xf32>
    %35 = vector.multi_reduction <maximumf>, %34, %cst_18 [1] : vector<32x8xf32> to vector<32xf32>
    %36 = vector.shape_cast %35 : vector<32xf32> to vector<32x1xf32>
    %37 = vector.broadcast %36 : vector<32x1xf32> to vector<32x8xf32>
    %38 = arith.subf %34, %37 : vector<32x8xf32>
    %39 = math.exp %38 : vector<32x8xf32>
    %cst_19 = arith.constant dense<0.000000e+00> : vector<32xf32>
    %40 = vector.multi_reduction <add>, %39, %cst_19 [1] : vector<32x8xf32> to vector<32xf32>
    %41 = vector.shape_cast %40 : vector<32xf32> to vector<32x1xf32>
    %42 = math.log %41 : vector<32x1xf32>
    %43 = vector.broadcast %42 : vector<32x1xf32> to vector<32x8xf32>
    %44 = arith.subf %38, %43 : vector<32x8xf32>
    %c0_20 = arith.constant 0 : index
    %c0_21 = arith.constant 0 : index
    %45 = vector.load %arg6[%c0_20, %c0_21] : memref<32x8xf32, #tpu.memory_space<vmem>>, vector<32x8xf32>
    tpu.vector_store %arg6[%c0_20, %c0_21], %44 {strides = array<i32>} : memref<32x8xf32, #tpu.memory_space<vmem>>, vector<32x8xf32>,
    return
  }
}

module attributes {stable_mosaic.version = 11 : i64} {
  func.func @_gat_layer_kernel(%arg0: memref<32x16xf32, #tpu.memory_space<vmem>>, %arg1: memref<16x32xf32, #tpu.memory_space<vmem>>, %arg2: memref<4x32xf32, #tpu.memory_space<vmem>>, %arg3: memref<32x4xf32, #tpu.memory_space<vmem>>, %arg4: memref<1x32xf32, #tpu.memory_space<vmem>>, %arg5: memref<32x32xf32, #tpu.memory_space<vmem>>, %arg6: memref<32x32xf32, #tpu.memory_space<vmem>>) attributes {dimension_semantics = [], scalar_prefetch = 0 : i64, scratch_operands = 0 : i64, tpu.core_type = #tpu.core_type<tc>} {
    %c0 = arith.constant 0 : index
    %c0_0 = arith.constant 0 : index
    %0 = vector.load %arg0[%c0, %c0_0] : memref<32x16xf32, #tpu.memory_space<vmem>>, vector<32x16xf32>
    %1 = arith.truncf %0 : vector<32x16xf32> to vector<32x16xbf16>
    %c0_1 = arith.constant 0 : index
    %c0_2 = arith.constant 0 : index
    %2 = vector.load %arg1[%c0_1, %c0_2] : memref<16x32xf32, #tpu.memory_space<vmem>>, vector<16x32xf32>
    %3 = arith.truncf %2 : vector<16x32xf32> to vector<16x32xbf16>
    %cst = arith.constant dense<0.000000e+00> : vector<32x32xf32>
    %4 = tpu.matmul %1, %3, %cst {dimension_numbers = #tpu.dot_dimension_numbers<[1], [0], [0], [1], [0, 0, 1, 1], [], []>} : vector<32x16xbf16>, vector<16x32xbf16>, vector<32x32xf32> -> vector<32x32xf32>
    %c0_3 = arith.constant 0 : index
    %c0_4 = arith.constant 0 : index
    %5 = vector.load %arg3[%c0_3, %c0_4] : memref<32x4xf32, #tpu.memory_space<vmem>>, vector<32x4xf32>
    %cst_5 = arith.constant dense<0.000000e+00> : vector<32x4xf32>
    %6 = tpu.matmul %4, %5, %cst_5 {dimension_numbers = #tpu.dot_dimension_numbers<[1], [0], [0], [1], [0, 0, 1, 1], [], []>} : vector<32x32xf32>, vector<32x4xf32>, vector<32x4xf32> -> vector<32x4xf32>
    %c0_6 = arith.constant 0 : index
    %c0_7 = arith.constant 0 : index
    %7 = vector.load %arg2[%c0_6, %c0_7] : memref<4x32xf32, #tpu.memory_space<vmem>>, vector<4x32xf32>
    %cst_8 = arith.constant dense<0.000000e+00> : vector<4x32xf32>
    %8 = tpu.matmul %7, %4, %cst_8 {dimension_numbers = #tpu.dot_dimension_numbers<[1], [1], [0], [0], [0, 0, 1, 0], [], []>} : vector<4x32xf32>, vector<32x32xf32>, vector<4x32xf32> -> vector<4x32xf32>
    %c0_9 = arith.constant 0 : index
    %c0_10 = arith.constant 0 : index
    %9 = vector.load %arg5[%c0_9, %c0_10] : memref<32x32xf32, #tpu.memory_space<vmem>>, vector<32x32xf32>
    %10 = vector.extract_strided_slice %6 {offsets = [0, 0], sizes = [32, 1], strides = [1, 1]} : vector<32x4xf32> to vector<32x1xf32>
    %11 = vector.extract_strided_slice %8 {offsets = [0, 0], sizes = [1, 32], strides = [1, 1]} : vector<4x32xf32> to vector<1x32xf32>
    %12 = vector.broadcast %10 : vector<32x1xf32> to vector<32x32xf32>
    %13 = vector.broadcast %11 : vector<1x32xf32> to vector<32x32xf32>
    %14 = arith.addf %12, %13 : vector<32x32xf32>
    %cst_11 = arith.constant 0.000000e+00 : f32
    %15 = vector.broadcast %cst_11 : f32 to vector<32x32xf32>
    %16 = arith.cmpf ogt, %14, %15 : vector<32x32xf32>
    %cst_12 = arith.constant 2.000000e-01 : f32
    %17 = vector.broadcast %cst_12 : f32 to vector<32x32xf32>
    %18 = arith.mulf %17, %14 : vector<32x32xf32>
    %19 = arith.select %16, %14, %18 : vector<32x32xi1>, vector<32x32xf32>
    %20 = arith.addf %19, %9 : vector<32x32xf32>
    %cst_13 = arith.constant dense<0xFF800000> : vector<32xf32>
    %21 = vector.multi_reduction <maximumf>, %20, %cst_13 [1] : vector<32x32xf32> to vector<32xf32>
    %22 = vector.shape_cast %21 : vector<32xf32> to vector<32x1xf32>
    %23 = vector.broadcast %22 : vector<32x1xf32> to vector<32x32xf32>
    %24 = arith.subf %20, %23 : vector<32x32xf32>
    %25 = math.exp %24 : vector<32x32xf32>
    %cst_14 = arith.constant dense<0.000000e+00> : vector<32xf32>
    %26 = vector.multi_reduction <add>, %25, %cst_14 [1] : vector<32x32xf32> to vector<32xf32>
    %27 = vector.shape_cast %26 : vector<32xf32> to vector<32x1xf32>
    %28 = tpu.reciprocal %27 {approx = true} : vector<32x1xf32> -> vector<32x1xf32>
    %29 = vector.broadcast %28 : vector<32x1xf32> to vector<32x32xf32>
    %30 = arith.mulf %25, %29 : vector<32x32xf32>
    %31 = vector.extract_strided_slice %4 {offsets = [0, 0], sizes = [32, 8], strides = [1, 1]} : vector<32x32xf32> to vector<32x8xf32>
    %32 = arith.truncf %30 : vector<32x32xf32> to vector<32x32xbf16>
    %33 = arith.truncf %31 : vector<32x8xf32> to vector<32x8xbf16>
    %cst_15 = arith.constant dense<0.000000e+00> : vector<32x8xf32>
    %34 = tpu.matmul %32, %33, %cst_15 {dimension_numbers = #tpu.dot_dimension_numbers<[1], [0], [0], [1], [0, 0, 1, 1], [], []>} : vector<32x32xbf16>, vector<32x8xbf16>, vector<32x8xf32> -> vector<32x8xf32>
    %35 = vector.extract_strided_slice %6 {offsets = [0, 1], sizes = [32, 1], strides = [1, 1]} : vector<32x4xf32> to vector<32x1xf32>
    %36 = vector.extract_strided_slice %8 {offsets = [1, 0], sizes = [1, 32], strides = [1, 1]} : vector<4x32xf32> to vector<1x32xf32>
    %37 = vector.broadcast %35 : vector<32x1xf32> to vector<32x32xf32>
    %38 = vector.broadcast %36 : vector<1x32xf32> to vector<32x32xf32>
    %39 = arith.addf %37, %38 : vector<32x32xf32>
    %cst_16 = arith.constant 0.000000e+00 : f32
    %40 = vector.broadcast %cst_16 : f32 to vector<32x32xf32>
    %41 = arith.cmpf ogt, %39, %40 : vector<32x32xf32>
    %cst_17 = arith.constant 2.000000e-01 : f32
    %42 = vector.broadcast %cst_17 : f32 to vector<32x32xf32>
    %43 = arith.mulf %42, %39 : vector<32x32xf32>
    %44 = arith.select %41, %39, %43 : vector<32x32xi1>, vector<32x32xf32>
    %45 = arith.addf %44, %9 : vector<32x32xf32>
    %cst_18 = arith.constant dense<0xFF800000> : vector<32xf32>
    %46 = vector.multi_reduction <maximumf>, %45, %cst_18 [1] : vector<32x32xf32> to vector<32xf32>
    %47 = vector.shape_cast %46 : vector<32xf32> to vector<32x1xf32>
    %48 = vector.broadcast %47 : vector<32x1xf32> to vector<32x32xf32>
    %49 = arith.subf %45, %48 : vector<32x32xf32>
    %50 = math.exp %49 : vector<32x32xf32>
    %cst_19 = arith.constant dense<0.000000e+00> : vector<32xf32>
    %51 = vector.multi_reduction <add>, %50, %cst_19 [1] : vector<32x32xf32> to vector<32xf32>
    %52 = vector.shape_cast %51 : vector<32xf32> to vector<32x1xf32>
    %53 = tpu.reciprocal %52 {approx = true} : vector<32x1xf32> -> vector<32x1xf32>
    %54 = vector.broadcast %53 : vector<32x1xf32> to vector<32x32xf32>
    %55 = arith.mulf %50, %54 : vector<32x32xf32>
    %56 = vector.extract_strided_slice %4 {offsets = [0, 8], sizes = [32, 8], strides = [1, 1]} : vector<32x32xf32> to vector<32x8xf32>
    %57 = arith.truncf %55 : vector<32x32xf32> to vector<32x32xbf16>
    %58 = arith.truncf %56 : vector<32x8xf32> to vector<32x8xbf16>
    %cst_20 = arith.constant dense<0.000000e+00> : vector<32x8xf32>
    %59 = tpu.matmul %57, %58, %cst_20 {dimension_numbers = #tpu.dot_dimension_numbers<[1], [0], [0], [1], [0, 0, 1, 1], [], []>} : vector<32x32xbf16>, vector<32x8xbf16>, vector<32x8xf32> -> vector<32x8xf32>
    %60 = vector.extract_strided_slice %6 {offsets = [0, 2], sizes = [32, 1], strides = [1, 1]} : vector<32x4xf32> to vector<32x1xf32>
    %61 = vector.extract_strided_slice %8 {offsets = [2, 0], sizes = [1, 32], strides = [1, 1]} : vector<4x32xf32> to vector<1x32xf32>
    %62 = vector.broadcast %60 : vector<32x1xf32> to vector<32x32xf32>
    %63 = vector.broadcast %61 : vector<1x32xf32> to vector<32x32xf32>
    %64 = arith.addf %62, %63 : vector<32x32xf32>
    %cst_21 = arith.constant 0.000000e+00 : f32
    %65 = vector.broadcast %cst_21 : f32 to vector<32x32xf32>
    %66 = arith.cmpf ogt, %64, %65 : vector<32x32xf32>
    %cst_22 = arith.constant 2.000000e-01 : f32
    %67 = vector.broadcast %cst_22 : f32 to vector<32x32xf32>
    %68 = arith.mulf %67, %64 : vector<32x32xf32>
    %69 = arith.select %66, %64, %68 : vector<32x32xi1>, vector<32x32xf32>
    %70 = arith.addf %69, %9 : vector<32x32xf32>
    %cst_23 = arith.constant dense<0xFF800000> : vector<32xf32>
    %71 = vector.multi_reduction <maximumf>, %70, %cst_23 [1] : vector<32x32xf32> to vector<32xf32>
    %72 = vector.shape_cast %71 : vector<32xf32> to vector<32x1xf32>
    %73 = vector.broadcast %72 : vector<32x1xf32> to vector<32x32xf32>
    %74 = arith.subf %70, %73 : vector<32x32xf32>
    %75 = math.exp %74 : vector<32x32xf32>
    %cst_24 = arith.constant dense<0.000000e+00> : vector<32xf32>
    %76 = vector.multi_reduction <add>, %75, %cst_24 [1] : vector<32x32xf32> to vector<32xf32>
    %77 = vector.shape_cast %76 : vector<32xf32> to vector<32x1xf32>
    %78 = tpu.reciprocal %77 {approx = true} : vector<32x1xf32> -> vector<32x1xf32>
    %79 = vector.broadcast %78 : vector<32x1xf32> to vector<32x32xf32>
    %80 = arith.mulf %75, %79 : vector<32x32xf32>
    %81 = vector.extract_strided_slice %4 {offsets = [0, 16], sizes = [32, 8], strides = [1, 1]} : vector<32x32xf32> to vector<32x8xf32>
    %82 = arith.truncf %80 : vector<32x32xf32> to vector<32x32xbf16>
    %83 = arith.truncf %81 : vector<32x8xf32> to vector<32x8xbf16>
    %cst_25 = arith.constant dense<0.000000e+00> : vector<32x8xf32>
    %84 = tpu.matmul %82, %83, %cst_25 {dimension_numbers = #tpu.dot_dimension_numbers<[1], [0], [0], [1], [0, 0, 1, 1], [], []>} : vector<32x32xbf16>, vector<32x8xbf16>, vector<32x8xf32> -> vector<32x8xf32>
    %85 = vector.extract_strided_slice %6 {offsets = [0, 3], sizes = [32, 1], strides = [1, 1]} : vector<32x4xf32> to vector<32x1xf32>
    %86 = vector.extract_strided_slice %8 {offsets = [3, 0], sizes = [1, 32], strides = [1, 1]} : vector<4x32xf32> to vector<1x32xf32>
    %87 = vector.broadcast %85 : vector<32x1xf32> to vector<32x32xf32>
    %88 = vector.broadcast %86 : vector<1x32xf32> to vector<32x32xf32>
    %89 = arith.addf %87, %88 : vector<32x32xf32>
    %cst_26 = arith.constant 0.000000e+00 : f32
    %90 = vector.broadcast %cst_26 : f32 to vector<32x32xf32>
    %91 = arith.cmpf ogt, %89, %90 : vector<32x32xf32>
    %cst_27 = arith.constant 2.000000e-01 : f32
    %92 = vector.broadcast %cst_27 : f32 to vector<32x32xf32>
    %93 = arith.mulf %92, %89 : vector<32x32xf32>
    %94 = arith.select %91, %89, %93 : vector<32x32xi1>, vector<32x32xf32>
    %95 = arith.addf %94, %9 : vector<32x32xf32>
    %cst_28 = arith.constant dense<0xFF800000> : vector<32xf32>
    %96 = vector.multi_reduction <maximumf>, %95, %cst_28 [1] : vector<32x32xf32> to vector<32xf32>
    %97 = vector.shape_cast %96 : vector<32xf32> to vector<32x1xf32>
    %98 = vector.broadcast %97 : vector<32x1xf32> to vector<32x32xf32>
    %99 = arith.subf %95, %98 : vector<32x32xf32>
    %100 = math.exp %99 : vector<32x32xf32>
    %cst_29 = arith.constant dense<0.000000e+00> : vector<32xf32>
    %101 = vector.multi_reduction <add>, %100, %cst_29 [1] : vector<32x32xf32> to vector<32xf32>
    %102 = vector.shape_cast %101 : vector<32xf32> to vector<32x1xf32>
    %103 = tpu.reciprocal %102 {approx = true} : vector<32x1xf32> -> vector<32x1xf32>
    %104 = vector.broadcast %103 : vector<32x1xf32> to vector<32x32xf32>
    %105 = arith.mulf %100, %104 : vector<32x32xf32>
    %106 = vector.extract_strided_slice %4 {offsets = [0, 24], sizes = [32, 8], strides = [1, 1]} : vector<32x32xf32> to vector<32x8xf32>
    %107 = arith.truncf %105 : vector<32x32xf32> to vector<32x32xbf16>
    %108 = arith.truncf %106 : vector<32x8xf32> to vector<32x8xbf16>
    %cst_30 = arith.constant dense<0.000000e+00> : vector<32x8xf32>
    %109 = tpu.matmul %107, %108, %cst_30 {dimension_numbers = #tpu.dot_dimension_numbers<[1], [0], [0], [1], [0, 0, 1, 1], [], []>} : vector<32x32xbf16>, vector<32x8xbf16>, vector<32x8xf32> -> vector<32x8xf32>
    %110 = tpu.concatenate %34, %59, %84, %109 in 1 : vector<32x8xf32>, vector<32x8xf32>, vector<32x8xf32>, vector<32x8xf32> -> vector<32x32xf32>
    %c0_31 = arith.constant 0 : index
    %c0_32 = arith.constant 0 : index
    %111 = vector.load %arg4[%c0_31, %c0_32] : memref<1x32xf32, #tpu.memory_space<vmem>>, vector<1x32xf32>
    %112 = vector.broadcast %111 : vector<1x32xf32> to vector<32x32xf32>
    %113 = arith.addf %110, %112 : vector<32x32xf32>
    %cst_33 = arith.constant 0.000000e+00 : f32
    %114 = vector.broadcast %cst_33 : f32 to vector<32x32xf32>
    %115 = arith.cmpf ogt, %113, %114 : vector<32x32xf32>
    %cst_34 = arith.constant 0.000000e+00 : f32
    %116 = vector.broadcast %cst_34 : f32 to vector<32x32xf32>
    %117 = arith.minimumf %113, %116 : vector<32x32xf32>
    %118 = math.exp %117 : vector<32x32xf32>
    %cst_35 = arith.constant 1.000000e+00 : f32
    %119 = vector.broadcast %cst_35 : f32 to vector<32x32xf32>
    %120 = arith.subf %118, %119 : vector<32x32xf32>
    %121 = arith.select %115, %113, %120 : vector<32x32xi1>, vector<32x32xf32>
    %c0_36 = arith.constant 0 : index
    %c0_37 = arith.constant 0 : index
    %122 = vector.load %arg6[%c0_36, %c0_37] : memref<32x32xf32, #tpu.memory_space<vmem>>, vector<32x32xf32>
    tpu.vector_store %arg6[%c0_36, %c0_37], %121 {strides = array<i32>} : memref<32x32xf32, #tpu.memory_space<vmem>>, vector<32x32xf32>,
    return
  }
}

</mosaic_0001>

<llo_original>
// kernel: gat_forward.3
$region0: #{gat_forward.3}
  #allocation0 [shape = 'u32[]', space=smem, size = 0x4, offset = 0x4, fixed_abs, tag = 'smem constant byte address 0x4 - core index']
  #allocation1 [shape = 'u32[144,128]{1,0:T(1,128)}', space=vmem, size = 0x12000, scoped, tag = 'internal scratch']
  %s0 = inlined_call_operand.vmem [shape: f32[32,32], index: 0, kind: input, shape index: {}]
  %s1 = inlined_call_operand.vmem [shape: f32[32,8], index: 1, kind: input, shape index: {}]
  %s2 = inlined_call_operand.vmem [shape: f32[1,8], index: 2, kind: input, shape index: {}]
  %s3 = inlined_call_operand.vmem [shape: f32[8,1], index: 3, kind: input, shape index: {}]
  %s4 = inlined_call_operand.vmem [shape: f32[1,8], index: 4, kind: input, shape index: {}]
  %s5 = inlined_call_operand.vmem [shape: f32[32,32], index: 5, kind: input, shape index: {}]
  %s6 = inlined_call_operand.vmem [shape: f32[32,8], index: 6, kind: output, shape index: {}]
  %s7 = sld [smem:[#allocation0]]
  $region34: #{gat_forward.3} parent=0
    _
  %s9 = ssub.s32 1, %s7
  %s10 = scalar_select 0, %s9, %s7
  // Predicated region
  $region2: #{gat_forward.3} parent=0 // pred_check
    _
  $region3: #{gat_forward.3} parent=0 // pred_check_branch
    %12 = sbr.rel (0) target = $region5
  $region4: #{gat_forward.3} parent=0 // pred_region
    _
  $region5: #{gat_forward.3} parent=0 // pred_fallthru
    _
  // Predicated region
  $region6: #{gat_forward.3} parent=0 // pred_check
    _
  $region7: #{gat_forward.3} parent=0 // pred_check_branch
    %14 = sbr.rel (0) target = $region9
  $region8: #{gat_forward.3} parent=0 // pred_region
    _
  $region9: #{gat_forward.3} parent=0 // pred_fallthru
    _
  // Predicated region
  $region10: #{gat_forward.3} parent=0 // pred_check
    _
  $region11: #{gat_forward.3} parent=0 // pred_check_branch
    %16 = sbr.rel (0) target = $region13
  $region12: #{gat_forward.3} parent=0 // pred_region
    _
  $region13: #{gat_forward.3} parent=0 // pred_fallthru
    _
  // Predicated region
  $region14: #{gat_forward.3} parent=0 // pred_check
    _
  $region15: #{gat_forward.3} parent=0 // pred_check_branch
    %18 = sbr.rel (0) target = $region17
  $region16: #{gat_forward.3} parent=0 // pred_region
    _
  $region17: #{gat_forward.3} parent=0 // pred_fallthru
    _
  // Predicated region
  $region18: #{gat_forward.3} parent=0 // pred_check
    _
  $region19: #{gat_forward.3} parent=0 // pred_check_branch
    %20 = sbr.rel (0) target = $region21
  $region20: #{gat_forward.3} parent=0 // pred_region
    _
  $region21: #{gat_forward.3} parent=0 // pred_fallthru
    _
  // Predicated region
  $region22: #{gat_forward.3} parent=0 // pred_check
    _
  $region23: #{gat_forward.3} parent=0 // pred_check_branch
    %22 = sbr.rel (0) target = $region25
  $region24: #{gat_forward.3} parent=0 // pred_region
    _
  $region25: #{gat_forward.3} parent=0 // pred_fallthru
    _
  %v24 = vld [vmem:[%s0] sm:$0xff]
  %v25 = vld [vmem:[%s0 + $0x8] sm:$0xff]
  %v26 = vld [vmem:[%s0 + $0x10] sm:$0xff]
  %v27 = vld [vmem:[%s0 + $0x18] sm:$0xff]
  %v28 = vpack.c.bf16 %v25, %v24
  %v29 = vpack.c.bf16 %v27, %v26
  %v30 = vld [vmem:[%s1] sm:$0xff]
  %v31 = vld [vmem:[%s1 + $0x8] sm:$0xff]
  %v32 = vld [vmem:[%s1 + $0x10] sm:$0xff]
  %v33 = vld [vmem:[%s1 + $0x18] sm:$0xff]
  %v34 = vpack.c.bf16 %v31, %v30
  %v35 = vpack.c.bf16 %v33, %v32
  %vm36 = vcmask 261120
  %v38 = vsel %vm36, %v28, 0
  %v41 = vsel %vm36, %v29, 0
  %43 = vmatprep.subr.bf16.mxu0 0
  %44 = vmatpush1.bf16.msra.mxu0 0
  %45 = vmatprep.subr.bf16.mxu0 0
  %46 = vmatpush1.bf16.msra.mxu0 0
  %47 = vmatprep.subr.bf16.mxu0 0
  %48 = vmatpush1.bf16.msra.mxu0 0
  %49 = vmatprep.subr.bf16.mxu0 0
  %50 = vmatpush1.bf16.msra.mxu0 0
  %51 = vmatprep.subr.bf16.mxu0 0
  %52 = vmatpush1.bf16.msra.mxu0 0
  %53 = vmatprep.subr.bf16.mxu0 0
  %54 = vmatpush1.bf16.msra.mxu0 0
  %55 = vmatprep.subr.bf16.mxu0 0
  %56 = vmatpush1.bf16.msra.mxu0 %v35
  %57 = vmatprep.subr.bf16.mxu0 0
  %58 = vmatpush1.bf16.msra.mxu0 %v34
  %59 = vmatprep.subr.bf16.mxu0 0
  %60 = vmatpush2.bf16.msra.mxu0 0
  %61 = vmatprep.subr.bf16.mxu0 0
  %62 = vmatpush2.bf16.msra.mxu0 0
  %63 = vmatprep.subr.bf16.mxu0 0
  %64 = vmatpush2.bf16.msra.mxu0 0
  %65 = vmatprep.subr.bf16.mxu0 0
  %66 = vmatpush2.bf16.msra.mxu0 0
  %67 = vmatprep.subr.bf16.mxu0 0
  %68 = vmatpush2.bf16.msra.mxu0 0
  %69 = vmatprep.subr.bf16.mxu0 0
  %70 = vmatpush2.bf16.msra.mxu0 0
  %71 = vmatprep.subr.bf16.mxu0 0
  %72 = vmatpush2.bf16.msra.mxu0 0
  %73 = vmatprep.subr.bf16.mxu0 0
  %74 = vmatpush2.bf16.msra.mxu0 0
  %75 = vmatprep.mubr.bf16.mxu0 0
  %76 = vmatmul.mubr.bf16.gmra.mxu0 %v38
  %v77 = vpop.f32.mrf.mxu0
  %v78 = vadd.f32 0.0, %v77
  %v79 = vpop.f32.mrf.mxu0
  %v80 = vpop.f32.mrf.mxu0
  %v81 = vadd.f32 0.0, %v80
  %v82 = vpop.f32.mrf.mxu0
  %83 = vmatprep.mubr.bf16.mxu0 0
  %84 = vmatmul.mubr.bf16.gmra.mxu0 %v41
  %v85 = vpop.f32.mrf.mxu0
  %v86 = vadd.f32 0.0, %v85
  %v87 = vpop.f32.mrf.mxu0
  %v88 = vpop.f32.mrf.mxu0
  %v89 = vadd.f32 0.0, %v88
  %v90 = vpop.f32.mrf.mxu0
  %91 = vdwg.mxu0
  %v92 = vld [vmem:[%s3] sm:$0xff]
  %vm93 = vcmask 64512
  %v95 = vsel %vm93, %v78, 0
  %v98 = vsel %vm93, %v81, 0
  %v101 = vsel %vm93, %v86, 0
  %v104 = vsel %vm93, %v89, 0
  %106 = vmatprep.subr.mxu0 0.0
  %107 = vmatpush1.msra.mxu0 0.0
  %108 = vmatprep.subr.mxu0 0.0
  %109 = vmatpush1.msra.mxu0 0.0
  %110 = vmatprep.subr.mxu0 0.0
  %111 = vmatpush1.msra.mxu0 0.0
  %112 = vmatprep.subr.mxu0 0.0
  %113 = vmatpush1.msra.mxu0 0.0
  %114 = vmatprep.subr.mxu0 0.0
  %115 = vmatpush1.msra.mxu0 0.0
  %116 = vmatprep.subr.mxu0 0.0
  %117 = vmatpush1.msra.mxu0 0.0
  %118 = vmatprep.subr.mxu0 0.0
  %119 = vmatpush1.msra.mxu0 0.0
  %120 = vmatprep.subr.mxu0 0.0
  %121 = vmatpush1.msra.mxu0 0.0
  %122 = vmatprep.subr.mxu0 0.0
  %123 = vmatpush1.msra.mxu0 0.0
  %124 = vmatprep.subr.mxu0 0.0
  %125 = vmatpush1.msra.mxu0 0.0
  %126 = vmatprep.subr.mxu0 0.0
  %127 = vmatpush1.msra.mxu0 0.0
  %128 = vmatprep.subr.mxu0 0.0
  %129 = vmatpush1.msra.mxu0 0.0
  %130 = vmatprep.subr.mxu0 0.0
  %131 = vmatpush1.msra.mxu0 0.0
  %132 = vmatprep.subr.mxu0 0.0
  %133 = vmatpush1.msra.mxu0 0.0
  %134 = vmatprep.subr.mxu0 0.0
  %135 = vmatpush1.msra.mxu0 0.0
  %136 = vmatprep.subr.mxu0 0.0
  %137 = vmatpush1.msra.mxu0 %v92
  %138 = vmatprep.subr.mxu0 0.0
  %139 = vmatpush2.msra.mxu0 0.0
  %140 = vmatprep.subr.mxu0 0.0
  %141 = vmatpush2.msra.mxu0 0.0
  %142 = vmatprep.subr.mxu0 0.0
  %143 = vmatpush2.msra.mxu0 0.0
  %144 = vmatprep.subr.mxu0 0.0
  %145 = vmatpush2.msra.mxu0 0.0
  %146 = vmatprep.subr.mxu0 0.0
  %147 = vmatpush2.msra.mxu0 0.0
  %148 = vmatprep.subr.mxu0 0.0
  %149 = vmatpush2.msra.mxu0 0.0
  %150 = vmatprep.subr.mxu0 0.0
  %151 = vmatpush2.msra.mxu0 0.0
  %152 = vmatprep.subr.mxu0 0.0
  %153 = vmatpush2.msra.mxu0 0.0
  %154 = vmatprep.subr.mxu0 0.0
  %155 = vmatpush2.msra.mxu0 0.0
  %156 = vmatprep.subr.mxu0 0.0
  %157 = vmatpush2.msra.mxu0 0.0
  %158 = vmatprep.subr.mxu0 0.0
  %159 = vmatpush2.msra.mxu0 0.0
  %160 = vmatprep.subr.mxu0 0.0
  %161 = vmatpush2.msra.mxu0 0.0
  %162 = vmatprep.subr.mxu0 0.0
  %163 = vmatpush2.msra.mxu0 0.0
  %164 = vmatprep.subr.mxu0 0.0
  %165 = vmatpush2.msra.mxu0 0.0
  %166 = vmatprep.subr.mxu0 0.0
  %167 = vmatpush2.msra.mxu0 0.0
  %168 = vmatprep.subr.mxu0 0.0
  %169 = vmatpush2.msra.mxu0 0.0
  %170 = vmatprep.mubr.f32.mxu0 0.0
  %171 = vmatmul.mubr.f32.gmra.mxu0 %v95
  %v172 = vpop.f32.mrf.mxu0
  %v173 = vadd.f32 0.0, %v172
  %v174 = vpop.f32.mrf.mxu0
  %175 = vmatprep.mubr.f32.mxu0 0.0
  %176 = vmatmul.mubr.f32.gmra.mxu0 %v98
  %v177 = vpop.f32.mrf.mxu0
  %v178 = vadd.f32 0.0, %v177
  %v179 = vpop.f32.mrf.mxu0
  %180 = vmatprep.mubr.f32.mxu0 0.0
  %181 = vmatmul.mubr.f32.gmra.mxu0 %v101
  %v182 = vpop.f32.mrf.mxu0
  %v183 = vadd.f32 0.0, %v182
  %v184 = vpop.f32.mrf.mxu0
  %185 = vmatprep.mubr.f32.mxu0 0.0
  %186 = vmatmul.mubr.f32.gmra.mxu0 %v104
  %v187 = vpop.f32.mrf.mxu0
  %v188 = vadd.f32 0.0, %v187
  %v189 = vpop.f32.mrf.mxu0
  %190 = vdwg.mxu0
  %v191 = vld [vmem:[%s2] sm:$0x1]
  %v193 = vsel %vm93, %v191, 0
  %195 = vmatprep.subr.mxu0 0.0
  %196 = vmatpush1.xpose.msra.mxu0 0.0
  %197 = vmatprep.subr.mxu0 0.0
  %198 = vmatpush1.xpose.msra.mxu0 0.0
  %199 = vmatprep.subr.mxu0 0.0
  %200 = vmatpush1.xpose.msra.mxu0 0.0
  %201 = vmatprep.subr.mxu0 0.0
  %202 = vmatpush1.xpose.msra.mxu0 0.0
  %203 = vmatprep.subr.mxu0 0.0
  %204 = vmatpush1.xpose.msra.mxu0 0.0
  %205 = vmatprep.subr.mxu0 0.0
  %206 = vmatpush1.xpose.msra.mxu0 0.0
  %207 = vmatprep.subr.mxu0 0.0
  %208 = vmatpush1.xpose.msra.mxu0 0.0
  %209 = vmatprep.subr.mxu0 0.0
  %210 = vmatpush1.xpose.msra.mxu0 0.0
  %211 = vmatprep.subr.mxu0 0.0
  %212 = vmatpush1.xpose.msra.mxu0 0.0
  %213 = vmatprep.subr.mxu0 0.0
  %214 = vmatpush1.xpose.msra.mxu0 0.0
  %215 = vmatprep.subr.mxu0 0.0
  %216 = vmatpush1.xpose.msra.mxu0 0.0
  %217 = vmatprep.subr.mxu0 0.0
  %218 = vmatpush1.xpose.msra.mxu0 0.0
  %219 = vmatprep.subr.mxu0 0.0
  %220 = vmatpush1.xpose.msra.mxu0 %v104
  %221 = vmatprep.subr.mxu0 0.0
  %222 = vmatpush1.xpose.msra.mxu0 %v101
  %223 = vmatprep.subr.mxu0 0.0
  %224 = vmatpush1.xpose.msra.mxu0 %v98
  %225 = vmatprep.subr.mxu0 0.0
  %226 = vmatpush1.xpose.msra.mxu0 %v95
  %227 = vmatprep.subr.mxu0 0.0
  %228 = vmatpush2.xpose.msra.mxu0 0.0
  %229 = vmatprep.subr.mxu0 0.0
  %230 = vmatpush2.xpose.msra.mxu0 0.0
  %231 = vmatprep.subr.mxu0 0.0
  %232 = vmatpush2.xpose.msra.mxu0 0.0
  %233 = vmatprep.subr.mxu0 0.0
  %234 = vmatpush2.xpose.msra.mxu0 0.0
  %235 = vmatprep.subr.mxu0 0.0
  %236 = vmatpush2.xpose.msra.mxu0 0.0
  %237 = vmatprep.subr.mxu0 0.0
  %238 = vmatpush2.xpose.msra.mxu0 0.0
  %239 = vmatprep.subr.mxu0 0.0
  %240 = vmatpush2.xpose.msra.mxu0 0.0
  %241 = vmatprep.subr.mxu0 0.0
  %242 = vmatpush2.xpose.msra.mxu0 0.0
  %243 = vmatprep.subr.mxu0 0.0
  %244 = vmatpush2.xpose.msra.mxu0 0.0
  %245 = vmatprep.subr.mxu0 0.0
  %246 = vmatpush2.xpose.msra.mxu0 0.0
  %247 = vmatprep.subr.mxu0 0.0
  %248 = vmatpush2.xpose.msra.mxu0 0.0
  %249 = vmatprep.subr.mxu0 0.0
  %250 = vmatpush2.xpose.msra.mxu0 0.0
  %251 = vmatprep.subr.mxu0 0.0
  %252 = vmatpush2.xpose.msra.mxu0 0.0
  %253 = vmatprep.subr.mxu0 0.0
  %254 = vmatpush2.xpose.msra.mxu0 0.0
  %255 = vmatprep.subr.mxu0 0.0
  %256 = vmatpush2.xpose.msra.mxu0 0.0
  %257 = vmatprep.subr.mxu0 0.0
  %258 = vmatpush2.xpose.msra.mxu0 0.0
  %259 = vmatprep.mubr.f32.mxu0 0.0
  %260 = vmatmul.mubr.f32.gmra.mxu0 %v193
  %v261 = vpop.f32.mrf.mxu0
  %v262 = vadd.f32 0.0, %v261
  %v263 = vpop.f32.mrf.mxu0
  %264 = vdwg.mxu0
  %v265 = vld [vmem:[%s5] sm:$0xff]
  %v266 = vld [vmem:[%s5 + $0x8] sm:$0xff]
  %v267 = vld [vmem:[%s5 + $0x10] sm:$0xff]
  %v268 = vld [vmem:[%s5 + $0x18] sm:$0xff]
  %270 = vset.pattern.permute.xlu0 0
  %271 = vperm.xlu0 %270, %v173
  %v272 = vpop.permute.xlu0 %271
  %275 = vset.pattern.permute.xlu0 0
  %276 = vperm.xlu0 %275, %v178
  %v277 = vpop.permute.xlu0 %276
  %280 = vset.pattern.permute.xlu0 0
  %281 = vperm.xlu0 %280, %v183
  %v282 = vpop.permute.xlu0 %281
  %285 = vset.pattern.permute.xlu0 0
  %286 = vperm.xlu0 %285, %v188
  %v287 = vpop.permute.xlu0 %286
  %v289 = vlaneseq
  %v290 = vshrl.u32 %v289, 7
  %v291 = vsub.s32 0, %v290
  %v292 = vrot.slane %v262, %v291
  %v293 = vadd.f32 %v272, %v292
  %v294 = vadd.f32 %v277, %v292
  %v295 = vadd.f32 %v282, %v292
  %v296 = vadd.f32 %v287, %v292
  %vm297 = vcmp.gt.f32.partialorder %v293, 0.0
  %vm298 = vcmp.gt.f32.partialorder %v294, 0.0
  %vm299 = vcmp.gt.f32.partialorder %v295, 0.0
  %vm300 = vcmp.gt.f32.partialorder %v296, 0.0
  %v301 = vmul.f32 %v293, 0.2
  %v302 = vmul.f32 %v294, 0.2
  %v303 = vmul.f32 %v295, 0.2
  %v304 = vmul.f32 %v296, 0.2
  %v305 = vsel %vm297, %v293, %v301
  %v306 = vsel %vm298, %v294, %v302
  %v307 = vsel %vm299, %v295, %v303
  %v308 = vsel %vm300, %v296, %v304
  %v309 = vadd.f32 %v305, %v265
  %v310 = vadd.f32 %v306, %v266
  %v311 = vadd.f32 %v307, %v267
  %v312 = vadd.f32 %v308, %v268
  %v313 = vsel %vm36, %v309, -inf
  %314 = vmax.xlane.f32.xlu0 %v313
  %v315 = vpop.xlane.xlu0 %314
  %v316 = vsel %vm36, %v310, -inf
  %317 = vmax.xlane.f32.xlu0 %v316
  %v318 = vpop.xlane.xlu0 %317
  %v319 = vsel %vm36, %v311, -inf
  %320 = vmax.xlane.f32.xlu0 %v319
  %v321 = vpop.xlane.xlu0 %320
  %v322 = vsel %vm36, %v312, -inf
  %323 = vmax.xlane.f32.xlu0 %v322
  %v324 = vpop.xlane.xlu0 %323
  %v325 = vsub.f32 %v309, %v315
  %v326 = vsub.f32 %v310, %v318
  %v327 = vsub.f32 %v311, %v321
  %v328 = vsub.f32 %v312, %v324
  %v329 = vmul.f32 %v325, 1.442695
  %v330 = vpow.pop %v329
  %v331 = vmul.f32 %v326, 1.442695
  %v332 = vpow.pop %v331
  %v333 = vmul.f32 %v327, 1.442695
  %v334 = vpow.pop %v333
  %v335 = vmul.f32 %v328, 1.442695
  %v336 = vpow.pop %v335
  %v337 = vsel %vm36, %v330, 0.0
  %338 = vadd.xlane.f32.xlu0 %v337
  %v339 = vpop.xlane.xlu0 %338
  %v340 = vsel %vm36, %v332, 0.0
  %341 = vadd.xlane.f32.xlu0 %v340
  %v342 = vpop.xlane.xlu0 %341
  %v343 = vsel %vm36, %v334, 0.0
  %344 = vadd.xlane.f32.xlu0 %v343
  %v345 = vpop.xlane.xlu0 %344
  %v346 = vsel %vm36, %v336, 0.0
  %347 = vadd.xlane.f32.xlu0 %v346
  %v348 = vpop.xlane.xlu0 %347
  %v349 = vrcp.pop %v339
  %v350 = vrcp.pop %v342
  %v351 = vrcp.pop %v345
  %v352 = vrcp.pop %v348
  %v353 = vmul.f32 %v330, %v349
  %v354 = vmul.f32 %v332, %v350
  %v355 = vmul.f32 %v334, %v351
  %v356 = vmul.f32 %v336, %v352
  %v357 = vpack.c.bf16 %v354, %v353
  %v358 = vpack.c.bf16 %v356, %v355
  %v359 = vpack.c.bf16 %v81, %v78
  %v360 = vpack.c.bf16 %v89, %v86
  %v361 = vld [vmem:[%s4] sm:$0x1]
  %v363 = vlaneseq
  %v364 = vshrl.u32 %v363, 7
  %v365 = vsub.s32 0, %v364
  %v366 = vrot.slane %v361, %v365
  %v369 = vsel %vm36, %v357, 0
  %v372 = vsel %vm36, %v358, 0
  %374 = vmatprep.subr.bf16.mxu0 0
  %375 = vmatpush1.bf16.msra.mxu0 0
  %376 = vmatprep.subr.bf16.mxu0 0
  %377 = vmatpush1.bf16.msra.mxu0 0
  %378 = vmatprep.subr.bf16.mxu0 0
  %379 = vmatpush1.bf16.msra.mxu0 0
  %380 = vmatprep.subr.bf16.mxu0 0
  %381 = vmatpush1.bf16.msra.mxu0 0
  %382 = vmatprep.subr.bf16.mxu0 0
  %383 = vmatpush1.bf16.msra.mxu0 0
  %384 = vmatprep.subr.bf16.mxu0 0
  %385 = vmatpush1.bf16.msra.mxu0 0
  %386 = vmatprep.subr.bf16.mxu0 0
  %387 = vmatpush1.bf16.msra.mxu0 %v360
  %388 = vmatprep.subr.bf16.mxu0 0
  %389 = vmatpush1.bf16.msra.mxu0 %v359
  %390 = vmatprep.subr.bf16.mxu0 0
  %391 = vmatpush2.bf16.msra.mxu0 0
  %392 = vmatprep.subr.bf16.mxu0 0
  %393 = vmatpush2.bf16.msra.mxu0 0
  %394 = vmatprep.subr.bf16.mxu0 0
  %395 = vmatpush2.bf16.msra.mxu0 0
  %396 = vmatprep.subr.bf16.mxu0 0
  %397 = vmatpush2.bf16.msra.mxu0 0
  %398 = vmatprep.subr.bf16.mxu0 0
  %399 = vmatpush2.bf16.msra.mxu0 0
  %400 = vmatprep.subr.bf16.mxu0 0
  %401 = vmatpush2.bf16.msra.mxu0 0
  %402 = vmatprep.subr.bf16.mxu0 0
  %403 = vmatpush2.bf16.msra.mxu0 0
  %404 = vmatprep.subr.bf16.mxu0 0
  %405 = vmatpush2.bf16.msra.mxu0 0
  %406 = vmatprep.mubr.bf16.mxu0 0
  %407 = vmatmul.mubr.bf16.gmra.mxu0 %v369
  %v408 = vpop.f32.mrf.mxu0
  %v409 = vadd.f32 %v366, %v408
  %v410 = vpop.f32.mrf.mxu0
  %v411 = vpop.f32.mrf.mxu0
  %v412 = vadd.f32 %v366, %v411
  %v413 = vpop.f32.mrf.mxu0
  %414 = vmatprep.mubr.bf16.mxu0 0
  %415 = vmatmul.mubr.bf16.gmra.mxu0 %v372
  %v416 = vpop.f32.mrf.mxu0
  %v417 = vadd.f32 %v366, %v416
  %v418 = vpop.f32.mrf.mxu0
  %v419 = vpop.f32.mrf.mxu0
  %v420 = vadd.f32 %v366, %v419
  %v421 = vpop.f32.mrf.mxu0
  %422 = vdwg.mxu0
  %v423 = vsel %vm93, %v409, -inf
  %424 = vmax.xlane.f32.xlu0 %v423
  %v425 = vpop.xlane.xlu0 %424
  %v426 = vsel %vm93, %v412, -inf
  %427 = vmax.xlane.f32.xlu0 %v426
  %v428 = vpop.xlane.xlu0 %427
  %v429 = vsel %vm93, %v417, -inf
  %430 = vmax.xlane.f32.xlu0 %v429
  %v431 = vpop.xlane.xlu0 %430
  %v432 = vsel %vm93, %v420, -inf
  %433 = vmax.xlane.f32.xlu0 %v432
  %v434 = vpop.xlane.xlu0 %433
  %v435 = vsub.f32 %v409, %v425
  %v436 = vsub.f32 %v412, %v428
  %v437 = vsub.f32 %v417, %v431
  %v438 = vsub.f32 %v420, %v434
  %v439 = vmul.f32 %v435, 1.442695
  %v440 = vpow.pop %v439
  %v441 = vmul.f32 %v436, 1.442695
  %v442 = vpow.pop %v441
  %v443 = vmul.f32 %v437, 1.442695
  %v444 = vpow.pop %v443
  %v445 = vmul.f32 %v438, 1.442695
  %v446 = vpow.pop %v445
  %v447 = vsel %vm93, %v440, 0.0
  %448 = vadd.xlane.f32.xlu0 %v447
  %v449 = vpop.xlane.xlu0 %448
  %v450 = vsel %vm93, %v442, 0.0
  %451 = vadd.xlane.f32.xlu0 %v450
  %v452 = vpop.xlane.xlu0 %451
  %v453 = vsel %vm93, %v444, 0.0
  %454 = vadd.xlane.f32.xlu0 %v453
  %v455 = vpop.xlane.xlu0 %454
  %v456 = vsel %vm93, %v446, 0.0
  %457 = vadd.xlane.f32.xlu0 %v456
  %v458 = vpop.xlane.xlu0 %457
  %v459 = vlog2.pop %v449
  %v460 = vmul.f32 %v459, 0.6931472
  %v461 = vlog2.pop %v452
  %v462 = vmul.f32 %v461, 0.6931472
  %v463 = vlog2.pop %v455
  %v464 = vmul.f32 %v463, 0.6931472
  %v465 = vlog2.pop %v458
  %v466 = vmul.f32 %v465, 0.6931472
  %v467 = vsub.f32 %v435, %v460
  %v468 = vsub.f32 %v436, %v462
  %v469 = vsub.f32 %v437, %v464
  %v470 = vsub.f32 %v438, %v466
  %471 = vst.msk [vmem:[%s6] sm:$0xff] %vm93, %v467
  %472 = vst.msk [vmem:[%s6 + $0x8] sm:$0xff] %vm93, %v468
  %473 = vst.msk [vmem:[%s6 + $0x10] sm:$0xff] %vm93, %v469
  %474 = vst.msk [vmem:[%s6 + $0x18] sm:$0xff] %vm93, %v470
  // Predicated region
  $region26: #{gat_forward.3} parent=0 // pred_check
    _
  $region27: #{gat_forward.3} parent=0 // pred_check_branch
    %476 = sbr.rel (0) target = $region29
  $region28: #{gat_forward.3} parent=0 // pred_region
    _
  $region29: #{gat_forward.3} parent=0 // pred_fallthru
    _
  // Predicated region
  $region30: #{gat_forward.3} parent=0 // pred_check
    _
  $region31: #{gat_forward.3} parent=0 // pred_check_branch
    %478 = sbr.rel (0) target = $region33
  $region32: #{gat_forward.3} parent=0 // pred_region
    _
  $region33: #{gat_forward.3} parent=0 // pred_fallthru
    _

// kernel: gat_forward.2
$region0: #{gat_forward.2}
  #allocation0 [shape = 'u32[]', space=smem, size = 0x4, offset = 0x4, fixed_abs, tag = 'smem constant byte address 0x4 - core index']
  #allocation1 [shape = 'u32[144,128]{1,0:T(1,128)}', space=vmem, size = 0x12000, scoped, tag = 'internal scratch']
  %s0 = inlined_call_operand.vmem [shape: f32[32,16], index: 0, kind: input, shape index: {}]
  %s1 = inlined_call_operand.vmem [shape: f32[16,32], index: 1, kind: input, shape index: {}]
  %s2 = inlined_call_operand.vmem [shape: f32[4,32], index: 2, kind: input, shape index: {}]
  %s3 = inlined_call_operand.vmem [shape: f32[32,4], index: 3, kind: input, shape index: {}]
  %s4 = inlined_call_operand.vmem [shape: f32[1,32], index: 4, kind: input, shape index: {}]
  %s5 = inlined_call_operand.vmem [shape: f32[32,32], index: 5, kind: input, shape index: {}]
  %s6 = inlined_call_operand.vmem [shape: f32[32,32], index: 6, kind: output, shape index: {}]
  %s7 = sld [smem:[#allocation0]]
  $region34: #{gat_forward.2} parent=0
    _
  %s9 = ssub.s32 1, %s7
  %s10 = scalar_select 0, %s9, %s7
  // Predicated region
  $region2: #{gat_forward.2} parent=0 // pred_check
    _
  $region3: #{gat_forward.2} parent=0 // pred_check_branch
    %12 = sbr.rel (0) target = $region5
  $region4: #{gat_forward.2} parent=0 // pred_region
    _
  $region5: #{gat_forward.2} parent=0 // pred_fallthru
    _
  // Predicated region
  $region6: #{gat_forward.2} parent=0 // pred_check
    _
  $region7: #{gat_forward.2} parent=0 // pred_check_branch
    %14 = sbr.rel (0) target = $region9
  $region8: #{gat_forward.2} parent=0 // pred_region
    _
  $region9: #{gat_forward.2} parent=0 // pred_fallthru
    _
  // Predicated region
  $region10: #{gat_forward.2} parent=0 // pred_check
    _
  $region11: #{gat_forward.2} parent=0 // pred_check_branch
    %16 = sbr.rel (0) target = $region13
  $region12: #{gat_forward.2} parent=0 // pred_region
    _
  $region13: #{gat_forward.2} parent=0 // pred_fallthru
    _
  // Predicated region
  $region14: #{gat_forward.2} parent=0 // pred_check
    _
  $region15: #{gat_forward.2} parent=0 // pred_check_branch
    %18 = sbr.rel (0) target = $region17
  $region16: #{gat_forward.2} parent=0 // pred_region
    _
  $region17: #{gat_forward.2} parent=0 // pred_fallthru
    _
  // Predicated region
  $region18: #{gat_forward.2} parent=0 // pred_check
    _
  $region19: #{gat_forward.2} parent=0 // pred_check_branch
    %20 = sbr.rel (0) target = $region21
  $region20: #{gat_forward.2} parent=0 // pred_region
    _
  $region21: #{gat_forward.2} parent=0 // pred_fallthru
    _
  // Predicated region
  $region22: #{gat_forward.2} parent=0 // pred_check
    _
  $region23: #{gat_forward.2} parent=0 // pred_check_branch
    %22 = sbr.rel (0) target = $region25
  $region24: #{gat_forward.2} parent=0 // pred_region
    _
  $region25: #{gat_forward.2} parent=0 // pred_fallthru
    _
  %v24 = vld [vmem:[%s0] sm:$0xff]
  %v25 = vld [vmem:[%s0 + $0x8] sm:$0xff]
  %v26 = vld [vmem:[%s0 + $0x10] sm:$0xff]
  %v27 = vld [vmem:[%s0 + $0x18] sm:$0xff]
  %v28 = vpack.c.bf16 %v25, %v24
  %v29 = vpack.c.bf16 %v27, %v26
  %v30 = vld [vmem:[%s1] sm:$0xff]
  %v31 = vld [vmem:[%s1 + $0x8] sm:$0xff]
  %v32 = vpack.c.bf16 %v31, %v30
  %vm33 = vcmask 130048
  %v35 = vsel %vm33, %v28, 0
  %v38 = vsel %vm33, %v29, 0
  %40 = vmatprep.subr.bf16.mxu0 0
  %41 = vmatpush1.bf16.msra.mxu0 0
  %42 = vmatprep.subr.bf16.mxu0 0
  %43 = vmatpush1.bf16.msra.mxu0 0
  %44 = vmatprep.subr.bf16.mxu0 0
  %45 = vmatpush1.bf16.msra.mxu0 0
  %46 = vmatprep.subr.bf16.mxu0 0
  %47 = vmatpush1.bf16.msra.mxu0 0
  %48 = vmatprep.subr.bf16.mxu0 0
  %49 = vmatpush1.bf16.msra.mxu0 0
  %50 = vmatprep.subr.bf16.mxu0 0
  %51 = vmatpush1.bf16.msra.mxu0 0
  %52 = vmatprep.subr.bf16.mxu0 0
  %53 = vmatpush1.bf16.msra.mxu0 0
  %54 = vmatprep.subr.bf16.mxu0 0
  %55 = vmatpush1.bf16.msra.mxu0 %v32
  %56 = vmatprep.subr.bf16.mxu0 0
  %57 = vmatpush2.bf16.msra.mxu0 0
  %58 = vmatprep.subr.bf16.mxu0 0
  %59 = vmatpush2.bf16.msra.mxu0 0
  %60 = vmatprep.subr.bf16.mxu0 0
  %61 = vmatpush2.bf16.msra.mxu0 0
  %62 = vmatprep.subr.bf16.mxu0 0
  %63 = vmatpush2.bf16.msra.mxu0 0
  %64 = vmatprep.subr.bf16.mxu0 0
  %65 = vmatpush2.bf16.msra.mxu0 0
  %66 = vmatprep.subr.bf16.mxu0 0
  %67 = vmatpush2.bf16.msra.mxu0 0
  %68 = vmatprep.subr.bf16.mxu0 0
  %69 = vmatpush2.bf16.msra.mxu0 0
  %70 = vmatprep.subr.bf16.mxu0 0
  %71 = vmatpush2.bf16.msra.mxu0 0
  %72 = vmatprep.mubr.bf16.mxu0 0
  %73 = vmatmul.mubr.bf16.gmra.mxu0 %v35
  %v74 = vpop.f32.mrf.mxu0
  %v75 = vadd.f32 0.0, %v74
  %v76 = vpop.f32.mrf.mxu0
  %v77 = vpop.f32.mrf.mxu0
  %v78 = vadd.f32 0.0, %v77
  %v79 = vpop.f32.mrf.mxu0
  %80 = vmatprep.mubr.bf16.mxu0 0
  %81 = vmatmul.mubr.bf16.gmra.mxu0 %v38
  %v82 = vpop.f32.mrf.mxu0
  %v83 = vadd.f32 0.0, %v82
  %v84 = vpop.f32.mrf.mxu0
  %v85 = vpop.f32.mrf.mxu0
  %v86 = vadd.f32 0.0, %v85
  %v87 = vpop.f32.mrf.mxu0
  %88 = vdwg.mxu0
  %v89 = vld [vmem:[%s3] sm:$0xff]
  %v90 = vld [vmem:[%s3 + $0x8] sm:$0xff]
  %v91 = vld [vmem:[%s3 + $0x10] sm:$0xff]
  %v92 = vld [vmem:[%s3 + $0x18] sm:$0xff]
  %vm93 = vcmask 261120
  %v95 = vsel %vm93, %v75, 0
  %v98 = vsel %vm93, %v78, 0
  %v101 = vsel %vm93, %v83, 0
  %v104 = vsel %vm93, %v86, 0
  %106 = vmatprep.subr.mxu0 0.0
  %107 = vmatpush1.msra.mxu0 0.0
  %108 = vmatprep.subr.mxu0 0.0
  %109 = vmatpush1.msra.mxu0 0.0
  %110 = vmatprep.subr.mxu0 0.0
  %111 = vmatpush1.msra.mxu0 0.0
  %112 = vmatprep.subr.mxu0 0.0
  %113 = vmatpush1.msra.mxu0 0.0
  %114 = vmatprep.subr.mxu0 0.0
  %115 = vmatpush1.msra.mxu0 0.0
  %116 = vmatprep.subr.mxu0 0.0
  %117 = vmatpush1.msra.mxu0 0.0
  %118 = vmatprep.subr.mxu0 0.0
  %119 = vmatpush1.msra.mxu0 0.0
  %120 = vmatprep.subr.mxu0 0.0
  %121 = vmatpush1.msra.mxu0 0.0
  %122 = vmatprep.subr.mxu0 0.0
  %123 = vmatpush1.msra.mxu0 0.0
  %124 = vmatprep.subr.mxu0 0.0
  %125 = vmatpush1.msra.mxu0 0.0
  %126 = vmatprep.subr.mxu0 0.0
  %127 = vmatpush1.msra.mxu0 0.0
  %128 = vmatprep.subr.mxu0 0.0
  %129 = vmatpush1.msra.mxu0 0.0
  %130 = vmatprep.subr.mxu0 0.0
  %131 = vmatpush1.msra.mxu0 %v92
  %132 = vmatprep.subr.mxu0 0.0
  %133 = vmatpush1.msra.mxu0 %v91
  %134 = vmatprep.subr.mxu0 0.0
  %135 = vmatpush1.msra.mxu0 %v90
  %136 = vmatprep.subr.mxu0 0.0
  %137 = vmatpush1.msra.mxu0 %v89
  %138 = vmatprep.subr.mxu0 0.0
  %139 = vmatpush2.msra.mxu0 0.0
  %140 = vmatprep.subr.mxu0 0.0
  %141 = vmatpush2.msra.mxu0 0.0
  %142 = vmatprep.subr.mxu0 0.0
  %143 = vmatpush2.msra.mxu0 0.0
  %144 = vmatprep.subr.mxu0 0.0
  %145 = vmatpush2.msra.mxu0 0.0
  %146 = vmatprep.subr.mxu0 0.0
  %147 = vmatpush2.msra.mxu0 0.0
  %148 = vmatprep.subr.mxu0 0.0
  %149 = vmatpush2.msra.mxu0 0.0
  %150 = vmatprep.subr.mxu0 0.0
  %151 = vmatpush2.msra.mxu0 0.0
  %152 = vmatprep.subr.mxu0 0.0
  %153 = vmatpush2.msra.mxu0 0.0
  %154 = vmatprep.subr.mxu0 0.0
  %155 = vmatpush2.msra.mxu0 0.0
  %156 = vmatprep.subr.mxu0 0.0
  %157 = vmatpush2.msra.mxu0 0.0
  %158 = vmatprep.subr.mxu0 0.0
  %159 = vmatpush2.msra.mxu0 0.0
  %160 = vmatprep.subr.mxu0 0.0
  %161 = vmatpush2.msra.mxu0 0.0
  %162 = vmatprep.subr.mxu0 0.0
  %163 = vmatpush2.msra.mxu0 0.0
  %164 = vmatprep.subr.mxu0 0.0
  %165 = vmatpush2.msra.mxu0 0.0
  %166 = vmatprep.subr.mxu0 0.0
  %167 = vmatpush2.msra.mxu0 0.0
  %168 = vmatprep.subr.mxu0 0.0
  %169 = vmatpush2.msra.mxu0 0.0
  %170 = vmatprep.mubr.f32.mxu0 0.0
  %171 = vmatmul.mubr.f32.gmra.mxu0 %v95
  %v172 = vpop.f32.mrf.mxu0
  %v173 = vadd.f32 0.0, %v172
  %v174 = vpop.f32.mrf.mxu0
  %175 = vmatprep.mubr.f32.mxu0 0.0
  %176 = vmatmul.mubr.f32.gmra.mxu0 %v98
  %v177 = vpop.f32.mrf.mxu0
  %v178 = vadd.f32 0.0, %v177
  %v179 = vpop.f32.mrf.mxu0
  %180 = vmatprep.mubr.f32.mxu0 0.0
  %181 = vmatmul.mubr.f32.gmra.mxu0 %v101
  %v182 = vpop.f32.mrf.mxu0
  %v183 = vadd.f32 0.0, %v182
  %v184 = vpop.f32.mrf.mxu0
  %185 = vmatprep.mubr.f32.mxu0 0.0
  %186 = vmatmul.mubr.f32.gmra.mxu0 %v104
  %v187 = vpop.f32.mrf.mxu0
  %v188 = vadd.f32 0.0, %v187
  %v189 = vpop.f32.mrf.mxu0
  %190 = vdwg.mxu0
  %v191 = vld [vmem:[%s2] sm:$0xf]
  %v193 = vsel %vm93, %v191, 0
  %195 = vmatprep.subr.mxu0 0.0
  %196 = vmatpush1.xpose.msra.mxu0 0.0
  %197 = vmatprep.subr.mxu0 0.0
  %198 = vmatpush1.xpose.msra.mxu0 0.0
  %199 = vmatprep.subr.mxu0 0.0
  %200 = vmatpush1.xpose.msra.mxu0 0.0
  %201 = vmatprep.subr.mxu0 0.0
  %202 = vmatpush1.xpose.msra.mxu0 0.0
  %203 = vmatprep.subr.mxu0 0.0
  %204 = vmatpush1.xpose.msra.mxu0 0.0
  %205 = vmatprep.subr.mxu0 0.0
  %206 = vmatpush1.xpose.msra.mxu0 0.0
  %207 = vmatprep.subr.mxu0 0.0
  %208 = vmatpush1.xpose.msra.mxu0 0.0
  %209 = vmatprep.subr.mxu0 0.0
  %210 = vmatpush1.xpose.msra.mxu0 0.0
  %211 = vmatprep.subr.mxu0 0.0
  %212 = vmatpush1.xpose.msra.mxu0 0.0
  %213 = vmatprep.subr.mxu0 0.0
  %214 = vmatpush1.xpose.msra.mxu0 0.0
  %215 = vmatprep.subr.mxu0 0.0
  %216 = vmatpush1.xpose.msra.mxu0 0.0
  %217 = vmatprep.subr.mxu0 0.0
  %218 = vmatpush1.xpose.msra.mxu0 0.0
  %219 = vmatprep.subr.mxu0 0.0
  %220 = vmatpush1.xpose.msra.mxu0 %v104
  %221 = vmatprep.subr.mxu0 0.0
  %222 = vmatpush1.xpose.msra.mxu0 %v101
  %223 = vmatprep.subr.mxu0 0.0
  %224 = vmatpush1.xpose.msra.mxu0 %v98
  %225 = vmatprep.subr.mxu0 0.0
  %226 = vmatpush1.xpose.msra.mxu0 %v95
  %227 = vmatprep.subr.mxu0 0.0
  %228 = vmatpush2.xpose.msra.mxu0 0.0
  %229 = vmatprep.subr.mxu0 0.0
  %230 = vmatpush2.xpose.msra.mxu0 0.0
  %231 = vmatprep.subr.mxu0 0.0
  %232 = vmatpush2.xpose.msra.mxu0 0.0
  %233 = vmatprep.subr.mxu0 0.0
  %234 = vmatpush2.xpose.msra.mxu0 0.0
  %235 = vmatprep.subr.mxu0 0.0
  %236 = vmatpush2.xpose.msra.mxu0 0.0
  %237 = vmatprep.subr.mxu0 0.0
  %238 = vmatpush2.xpose.msra.mxu0 0.0
  %239 = vmatprep.subr.mxu0 0.0
  %240 = vmatpush2.xpose.msra.mxu0 0.0
  %241 = vmatprep.subr.mxu0 0.0
  %242 = vmatpush2.xpose.msra.mxu0 0.0
  %243 = vmatprep.subr.mxu0 0.0
  %244 = vmatpush2.xpose.msra.mxu0 0.0
  %245 = vmatprep.subr.mxu0 0.0
  %246 = vmatpush2.xpose.msra.mxu0 0.0
  %247 = vmatprep.subr.mxu0 0.0
  %248 = vmatpush2.xpose.msra.mxu0 0.0
  %249 = vmatprep.subr.mxu0 0.0
  %250 = vmatpush2.xpose.msra.mxu0 0.0
  %251 = vmatprep.subr.mxu0 0.0
  %252 = vmatpush2.xpose.msra.mxu0 0.0
  %253 = vmatprep.subr.mxu0 0.0
  %254 = vmatpush2.xpose.msra.mxu0 0.0
  %255 = vmatprep.subr.mxu0 0.0
  %256 = vmatpush2.xpose.msra.mxu0 0.0
  %257 = vmatprep.subr.mxu0 0.0
  %258 = vmatpush2.xpose.msra.mxu0 0.0
  %259 = vmatprep.mubr.f32.mxu0 0.0
  %260 = vmatmul.mubr.f32.gmra.mxu0 %v193
  %v261 = vpop.f32.mrf.mxu0
  %v262 = vadd.f32 0.0, %v261
  %v263 = vpop.f32.mrf.mxu0
  %264 = vdwg.mxu0
  %v265 = vld [vmem:[%s5] sm:$0xff]
  %v266 = vld [vmem:[%s5 + $0x8] sm:$0xff]
  %v267 = vld [vmem:[%s5 + $0x10] sm:$0xff]
  %v268 = vld [vmem:[%s5 + $0x18] sm:$0xff]
  %270 = vset.pattern.permute.xlu0 0
  %271 = vperm.xlu0 %270, %v173
  %v272 = vpop.permute.xlu0 %271
  %275 = vset.pattern.permute.xlu0 0
  %276 = vperm.xlu0 %275, %v178
  %v277 = vpop.permute.xlu0 %276
  %280 = vset.pattern.permute.xlu0 0
  %281 = vperm.xlu0 %280, %v183
  %v282 = vpop.permute.xlu0 %281
  %285 = vset.pattern.permute.xlu0 0
  %286 = vperm.xlu0 %285, %v188
  %v287 = vpop.permute.xlu0 %286
  %v289 = vlaneseq
  %v290 = vshrl.u32 %v289, 7
  %v291 = vsub.s32 0, %v290
  %v292 = vrot.slane %v262, %v291
  %v293 = vadd.f32 %v272, %v292
  %v294 = vadd.f32 %v277, %v292
  %v295 = vadd.f32 %v282, %v292
  %v296 = vadd.f32 %v287, %v292
  %vm297 = vcmp.gt.f32.partialorder %v293, 0.0
  %vm298 = vcmp.gt.f32.partialorder %v294, 0.0
  %vm299 = vcmp.gt.f32.partialorder %v295, 0.0
  %vm300 = vcmp.gt.f32.partialorder %v296, 0.0
  %v301 = vmul.f32 %v293, 0.2
  %v302 = vmul.f32 %v294, 0.2
  %v303 = vmul.f32 %v295, 0.2
  %v304 = vmul.f32 %v296, 0.2
  %v305 = vsel %vm297, %v293, %v301
  %v306 = vsel %vm298, %v294, %v302
  %v307 = vsel %vm299, %v295, %v303
  %v308 = vsel %vm300, %v296, %v304
  %v309 = vadd.f32 %v305, %v265
  %v310 = vadd.f32 %v306, %v266
  %v311 = vadd.f32 %v307, %v267
  %v312 = vadd.f32 %v308, %v268
  %v313 = vsel %vm93, %v309, -inf
  %314 = vmax.xlane.f32.xlu0 %v313
  %v315 = vpop.xlane.xlu0 %314
  %v316 = vsel %vm93, %v310, -inf
  %317 = vmax.xlane.f32.xlu0 %v316
  %v318 = vpop.xlane.xlu0 %317
  %v319 = vsel %vm93, %v311, -inf
  %320 = vmax.xlane.f32.xlu0 %v319
  %v321 = vpop.xlane.xlu0 %320
  %v322 = vsel %vm93, %v312, -inf
  %323 = vmax.xlane.f32.xlu0 %v322
  %v324 = vpop.xlane.xlu0 %323
  %v325 = vsub.f32 %v309, %v315
  %v326 = vsub.f32 %v310, %v318
  %v327 = vsub.f32 %v311, %v321
  %v328 = vsub.f32 %v312, %v324
  %v329 = vmul.f32 %v325, 1.442695
  %v330 = vpow.pop %v329
  %v331 = vmul.f32 %v326, 1.442695
  %v332 = vpow.pop %v331
  %v333 = vmul.f32 %v327, 1.442695
  %v334 = vpow.pop %v333
  %v335 = vmul.f32 %v328, 1.442695
  %v336 = vpow.pop %v335
  %v337 = vsel %vm93, %v330, 0.0
  %338 = vadd.xlane.f32.xlu0 %v337
  %v339 = vpop.xlane.xlu0 %338
  %v340 = vsel %vm93, %v332, 0.0
  %341 = vadd.xlane.f32.xlu0 %v340
  %v342 = vpop.xlane.xlu0 %341
  %v343 = vsel %vm93, %v334, 0.0
  %344 = vadd.xlane.f32.xlu0 %v343
  %v345 = vpop.xlane.xlu0 %344
  %v346 = vsel %vm93, %v336, 0.0
  %347 = vadd.xlane.f32.xlu0 %v346
  %v348 = vpop.xlane.xlu0 %347
  %v349 = vrcp.pop %v339
  %v350 = vrcp.pop %v342
  %v351 = vrcp.pop %v345
  %v352 = vrcp.pop %v348
  %v353 = vmul.f32 %v330, %v349
  %v354 = vmul.f32 %v332, %v350
  %v355 = vmul.f32 %v334, %v351
  %v356 = vmul.f32 %v336, %v352
  %v357 = vpack.c.bf16 %v354, %v353
  %v358 = vpack.c.bf16 %v356, %v355
  %v359 = vpack.c.bf16 %v78, %v75
  %v360 = vpack.c.bf16 %v86, %v83
  %v362 = vsel %vm93, %v357, 0
  %v365 = vsel %vm93, %v358, 0
  %367 = vmatprep.subr.bf16.mxu0 0
  %368 = vmatpush1.bf16.msra.mxu0 0
  %369 = vmatprep.subr.bf16.mxu0 0
  %370 = vmatpush1.bf16.msra.mxu0 0
  %371 = vmatprep.subr.bf16.mxu0 0
  %372 = vmatpush1.bf16.msra.mxu0 0
  %373 = vmatprep.subr.bf16.mxu0 0
  %374 = vmatpush1.bf16.msra.mxu0 0
  %375 = vmatprep.subr.bf16.mxu0 0
  %376 = vmatpush1.bf16.msra.mxu0 0
  %377 = vmatprep.subr.bf16.mxu0 0
  %378 = vmatpush1.bf16.msra.mxu0 0
  %379 = vmatprep.subr.bf16.mxu0 0
  %380 = vmatpush1.bf16.msra.mxu0 %v360
  %381 = vmatprep.subr.bf16.mxu0 0
  %382 = vmatpush1.bf16.msra.mxu0 %v359
  %383 = vmatprep.subr.bf16.mxu0 0
  %384 = vmatpush2.bf16.msra.mxu0 0
  %385 = vmatprep.subr.bf16.mxu0 0
  %386 = vmatpush2.bf16.msra.mxu0 0
  %387 = vmatprep.subr.bf16.mxu0 0
  %388 = vmatpush2.bf16.msra.mxu0 0
  %389 = vmatprep.subr.bf16.mxu0 0
  %390 = vmatpush2.bf16.msra.mxu0 0
  %391 = vmatprep.subr.bf16.mxu0 0
  %392 = vmatpush2.bf16.msra.mxu0 0
  %393 = vmatprep.subr.bf16.mxu0 0
  %394 = vmatpush2.bf16.msra.mxu0 0
  %395 = vmatprep.subr.bf16.mxu0 0
  %396 = vmatpush2.bf16.msra.mxu0 0
  %397 = vmatprep.subr.bf16.mxu0 0
  %398 = vmatpush2.bf16.msra.mxu0 0
  %399 = vmatprep.mubr.bf16.mxu0 0
  %400 = vmatmul.mubr.bf16.gmra.mxu0 %v362
  %v401 = vpop.f32.mrf.mxu0
  %v402 = vadd.f32 0.0, %v401
  %v403 = vpop.f32.mrf.mxu0
  %v404 = vpop.f32.mrf.mxu0
  %v405 = vadd.f32 0.0, %v404
  %v406 = vpop.f32.mrf.mxu0
  %407 = vmatprep.mubr.bf16.mxu0 0
  %408 = vmatmul.mubr.bf16.gmra.mxu0 %v365
  %v409 = vpop.f32.mrf.mxu0
  %v410 = vadd.f32 0.0, %v409
  %v411 = vpop.f32.mrf.mxu0
  %v412 = vpop.f32.mrf.mxu0
  %v413 = vadd.f32 0.0, %v412
  %v414 = vpop.f32.mrf.mxu0
  %415 = vdwg.mxu0
  %416 = vset.pattern.permute.xlu0 1
  %417 = vperm.xlu0 %416, %v173
  %v418 = vpop.permute.xlu0 %417
  %420 = vset.pattern.permute.xlu0 1
  %421 = vperm.xlu0 %420, %v178
  %v422 = vpop.permute.xlu0 %421
  %424 = vset.pattern.permute.xlu0 1
  %425 = vperm.xlu0 %424, %v183
  %v426 = vpop.permute.xlu0 %425
  %428 = vset.pattern.permute.xlu0 1
  %429 = vperm.xlu0 %428, %v188
  %v430 = vpop.permute.xlu0 %429
  %v432 = vlaneseq
  %v433 = vshrl.u32 %v432, 7
  %v434 = vsub.s32 1, %v433
  %v435 = vrot.slane %v262, %v434
  %v436 = vadd.f32 %v418, %v435
  %v437 = vadd.f32 %v422, %v435
  %v438 = vadd.f32 %v426, %v435
  %v439 = vadd.f32 %v430, %v435
  %vm440 = vcmp.gt.f32.partialorder %v436, 0.0
  %vm441 = vcmp.gt.f32.partialorder %v437, 0.0
  %vm442 = vcmp.gt.f32.partialorder %v438, 0.0
  %vm443 = vcmp.gt.f32.partialorder %v439, 0.0
  %v444 = vmul.f32 %v436, 0.2
  %v445 = vmul.f32 %v437, 0.2
  %v446 = vmul.f32 %v438, 0.2
  %v447 = vmul.f32 %v439, 0.2
  %v448 = vsel %vm440, %v436, %v444
  %v449 = vsel %vm441, %v437, %v445
  %v450 = vsel %vm442, %v438, %v446
  %v451 = vsel %vm443, %v439, %v447
  %v452 = vadd.f32 %v448, %v265
  %v453 = vadd.f32 %v449, %v266
  %v454 = vadd.f32 %v450, %v267
  %v455 = vadd.f32 %v451, %v268
  %v456 = vsel %vm93, %v452, -inf
  %457 = vmax.xlane.f32.xlu0 %v456
  %v458 = vpop.xlane.xlu0 %457
  %v459 = vsel %vm93, %v453, -inf
  %460 = vmax.xlane.f32.xlu0 %v459
  %v461 = vpop.xlane.xlu0 %460
  %v462 = vsel %vm93, %v454, -inf
  %463 = vmax.xlane.f32.xlu0 %v462
  %v464 = vpop.xlane.xlu0 %463
  %v465 = vsel %vm93, %v455, -inf
  %466 = vmax.xlane.f32.xlu0 %v465
  %v467 = vpop.xlane.xlu0 %466
  %v468 = vsub.f32 %v452, %v458
  %v469 = vsub.f32 %v453, %v461
  %v470 = vsub.f32 %v454, %v464
  %v471 = vsub.f32 %v455, %v467
  %v472 = vmul.f32 %v468, 1.442695
  %v473 = vpow.pop %v472
  %v474 = vmul.f32 %v469, 1.442695
  %v475 = vpow.pop %v474
  %v476 = vmul.f32 %v470, 1.442695
  %v477 = vpow.pop %v476
  %v478 = vmul.f32 %v471, 1.442695
  %v479 = vpow.pop %v478
  %v480 = vsel %vm93, %v473, 0.0
  %481 = vadd.xlane.f32.xlu0 %v480
  %v482 = vpop.xlane.xlu0 %481
  %v483 = vsel %vm93, %v475, 0.0
  %484 = vadd.xlane.f32.xlu0 %v483
  %v485 = vpop.xlane.xlu0 %484
  %v486 = vsel %vm93, %v477, 0.0
  %487 = vadd.xlane.f32.xlu0 %v486
  %v488 = vpop.xlane.xlu0 %487
  %v489 = vsel %vm93, %v479, 0.0
  %490 = vadd.xlane.f32.xlu0 %v489
  %v491 = vpop.xlane.xlu0 %490
  %v492 = vrcp.pop %v482
  %v493 = vrcp.pop %v485
  %v494 = vrcp.pop %v488
  %v495 = vrcp.pop %v491
  %v496 = vmul.f32 %v473, %v492
  %v497 = vmul.f32 %v475, %v493
  %v498 = vmul.f32 %v477, %v494
  %v499 = vmul.f32 %v479, %v495
  %v500 = vpack.c.bf16 %v497, %v496
  %v501 = vpack.c.bf16 %v499, %v498
  %504 = vrot.lane.b32.xlu0 %v359, 120
  %v505 = vpop.permute.xlu0 %504
  %506 = vrot.lane.b32.xlu0 %v360, 120
  %v507 = vpop.permute.xlu0 %506
  %v511 = vsel %vm93, %v500, 0
  %v514 = vsel %vm93, %v501, 0
  %516 = vmatprep.subr.bf16.mxu0 0
  %517 = vmatpush1.bf16.msra.mxu0 0
  %518 = vmatprep.subr.bf16.mxu0 0
  %519 = vmatpush1.bf16.msra.mxu0 0
  %520 = vmatprep.subr.bf16.mxu0 0
  %521 = vmatpush1.bf16.msra.mxu0 0
  %522 = vmatprep.subr.bf16.mxu0 0
  %523 = vmatpush1.bf16.msra.mxu0 0
  %524 = vmatprep.subr.bf16.mxu0 0
  %525 = vmatpush1.bf16.msra.mxu0 0
  %526 = vmatprep.subr.bf16.mxu0 0
  %527 = vmatpush1.bf16.msra.mxu0 0
  %528 = vmatprep.subr.bf16.mxu0 0
  %529 = vmatpush1.bf16.msra.mxu0 %v507
  %530 = vmatprep.subr.bf16.mxu0 0
  %531 = vmatpush1.bf16.msra.mxu0 %v505
  %532 = vmatprep.subr.bf16.mxu0 0
  %533 = vmatpush2.bf16.msra.mxu0 0
  %534 = vmatprep.subr.bf16.mxu0 0
  %535 = vmatpush2.bf16.msra.mxu0 0
  %536 = vmatprep.subr.bf16.mxu0 0
  %537 = vmatpush2.bf16.msra.mxu0 0
  %538 = vmatprep.subr.bf16.mxu0 0
  %539 = vmatpush2.bf16.msra.mxu0 0
  %540 = vmatprep.subr.bf16.mxu0 0
  %541 = vmatpush2.bf16.msra.mxu0 0
  %542 = vmatprep.subr.bf16.mxu0 0
  %543 = vmatpush2.bf16.msra.mxu0 0
  %544 = vmatprep.subr.bf16.mxu0 0
  %545 = vmatpush2.bf16.msra.mxu0 0
  %546 = vmatprep.subr.bf16.mxu0 0
  %547 = vmatpush2.bf16.msra.mxu0 0
  %548 = vmatprep.mubr.bf16.mxu0 0
  %549 = vmatmul.mubr.bf16.gmra.mxu0 %v511
  %v550 = vpop.f32.mrf.mxu0
  %v551 = vadd.f32 0.0, %v550
  %v552 = vpop.f32.mrf.mxu0
  %v553 = vpop.f32.mrf.mxu0
  %v554 = vadd.f32 0.0, %v553
  %v555 = vpop.f32.mrf.mxu0
  %556 = vmatprep.mubr.bf16.mxu0 0
  %557 = vmatmul.mubr.bf16.gmra.mxu0 %v514
  %v558 = vpop.f32.mrf.mxu0
  %v559 = vadd.f32 0.0, %v558
  %v560 = vpop.f32.mrf.mxu0
  %v561 = vpop.f32.mrf.mxu0
  %v562 = vadd.f32 0.0, %v561
  %v563 = vpop.f32.mrf.mxu0
  %564 = vdwg.mxu0
  %565 = vset.pattern.permute.xlu0 2
  %566 = vperm.xlu0 %565, %v173
  %v567 = vpop.permute.xlu0 %566
  %569 = vset.pattern.permute.xlu0 2
  %570 = vperm.xlu0 %569, %v178
  %v571 = vpop.permute.xlu0 %570
  %573 = vset.pattern.permute.xlu0 2
  %574 = vperm.xlu0 %573, %v183
  %v575 = vpop.permute.xlu0 %574
  %577 = vset.pattern.permute.xlu0 2
  %578 = vperm.xlu0 %577, %v188
  %v579 = vpop.permute.xlu0 %578
  %v581 = vlaneseq
  %v582 = vshrl.u32 %v581, 7
  %v583 = vsub.s32 2, %v582
  %v584 = vrot.slane %v262, %v583
  %v585 = vadd.f32 %v567, %v584
  %v586 = vadd.f32 %v571, %v584
  %v587 = vadd.f32 %v575, %v584
  %v588 = vadd.f32 %v579, %v584
  %vm589 = vcmp.gt.f32.partialorder %v585, 0.0
  %vm590 = vcmp.gt.f32.partialorder %v586, 0.0
  %vm591 = vcmp.gt.f32.partialorder %v587, 0.0
  %vm592 = vcmp.gt.f32.partialorder %v588, 0.0
  %v593 = vmul.f32 %v585, 0.2
  %v594 = vmul.f32 %v586, 0.2
  %v595 = vmul.f32 %v587, 0.2
  %v596 = vmul.f32 %v588, 0.2
  %v597 = vsel %vm589, %v585, %v593
  %v598 = vsel %vm590, %v586, %v594
  %v599 = vsel %vm591, %v587, %v595
  %v600 = vsel %vm592, %v588, %v596
  %v601 = vadd.f32 %v597, %v265
  %v602 = vadd.f32 %v598, %v266
  %v603 = vadd.f32 %v599, %v267
  %v604 = vadd.f32 %v600, %v268
  %v605 = vsel %vm93, %v601, -inf
  %606 = vmax.xlane.f32.xlu0 %v605
  %v607 = vpop.xlane.xlu0 %606
  %v608 = vsel %vm93, %v602, -inf
  %609 = vmax.xlane.f32.xlu0 %v608
  %v610 = vpop.xlane.xlu0 %609
  %v611 = vsel %vm93, %v603, -inf
  %612 = vmax.xlane.f32.xlu0 %v611
  %v613 = vpop.xlane.xlu0 %612
  %v614 = vsel %vm93, %v604, -inf
  %615 = vmax.xlane.f32.xlu0 %v614
  %v616 = vpop.xlane.xlu0 %615
  %v617 = vsub.f32 %v601, %v607
  %v618 = vsub.f32 %v602, %v610
  %v619 = vsub.f32 %v603, %v613
  %v620 = vsub.f32 %v604, %v616
  %v621 = vmul.f32 %v617, 1.442695
  %v622 = vpow.pop %v621
  %v623 = vmul.f32 %v618, 1.442695
  %v624 = vpow.pop %v623
  %v625 = vmul.f32 %v619, 1.442695
  %v626 = vpow.pop %v625
  %v627 = vmul.f32 %v620, 1.442695
  %v628 = vpow.pop %v627
  %v629 = vsel %vm93, %v622, 0.0
  %630 = vadd.xlane.f32.xlu0 %v629
  %v631 = vpop.xlane.xlu0 %630
  %v632 = vsel %vm93, %v624, 0.0
  %633 = vadd.xlane.f32.xlu0 %v632
  %v634 = vpop.xlane.xlu0 %633
  %v635 = vsel %vm93, %v626, 0.0
  %636 = vadd.xlane.f32.xlu0 %v635
  %v637 = vpop.xlane.xlu0 %636
  %v638 = vsel %vm93, %v628, 0.0
  %639 = vadd.xlane.f32.xlu0 %v638
  %v640 = vpop.xlane.xlu0 %639
  %v641 = vrcp.pop %v631
  %v642 = vrcp.pop %v634
  %v643 = vrcp.pop %v637
  %v644 = vrcp.pop %v640
  %v645 = vmul.f32 %v622, %v641
  %v646 = vmul.f32 %v624, %v642
  %v647 = vmul.f32 %v626, %v643
  %v648 = vmul.f32 %v628, %v644
  %v649 = vpack.c.bf16 %v646, %v645
  %v650 = vpack.c.bf16 %v648, %v647
  %651 = vrot.lane.b32.xlu0 %v359, 112
  %v652 = vpop.permute.xlu0 %651
  %653 = vrot.lane.b32.xlu0 %v360, 112
  %v654 = vpop.permute.xlu0 %653
  %v658 = vsel %vm93, %v649, 0
  %v661 = vsel %vm93, %v650, 0
  %663 = vmatprep.subr.bf16.mxu0 0
  %664 = vmatpush1.bf16.msra.mxu0 0
  %665 = vmatprep.subr.bf16.mxu0 0
  %666 = vmatpush1.bf16.msra.mxu0 0
  %667 = vmatprep.subr.bf16.mxu0 0
  %668 = vmatpush1.bf16.msra.mxu0 0
  %669 = vmatprep.subr.bf16.mxu0 0
  %670 = vmatpush1.bf16.msra.mxu0 0
  %671 = vmatprep.subr.bf16.mxu0 0
  %672 = vmatpush1.bf16.msra.mxu0 0
  %673 = vmatprep.subr.bf16.mxu0 0
  %674 = vmatpush1.bf16.msra.mxu0 0
  %675 = vmatprep.subr.bf16.mxu0 0
  %676 = vmatpush1.bf16.msra.mxu0 %v654
  %677 = vmatprep.subr.bf16.mxu0 0
  %678 = vmatpush1.bf16.msra.mxu0 %v652
  %679 = vmatprep.subr.bf16.mxu0 0
  %680 = vmatpush2.bf16.msra.mxu0 0
  %681 = vmatprep.subr.bf16.mxu0 0
  %682 = vmatpush2.bf16.msra.mxu0 0
  %683 = vmatprep.subr.bf16.mxu0 0
  %684 = vmatpush2.bf16.msra.mxu0 0
  %685 = vmatprep.subr.bf16.mxu0 0
  %686 = vmatpush2.bf16.msra.mxu0 0
  %687 = vmatprep.subr.bf16.mxu0 0
  %688 = vmatpush2.bf16.msra.mxu0 0
  %689 = vmatprep.subr.bf16.mxu0 0
  %690 = vmatpush2.bf16.msra.mxu0 0
  %691 = vmatprep.subr.bf16.mxu0 0
  %692 = vmatpush2.bf16.msra.mxu0 0
  %693 = vmatprep.subr.bf16.mxu0 0
  %694 = vmatpush2.bf16.msra.mxu0 0
  %695 = vmatprep.mubr.bf16.mxu0 0
  %696 = vmatmul.mubr.bf16.gmra.mxu0 %v658
  %v697 = vpop.f32.mrf.mxu0
  %v698 = vadd.f32 0.0, %v697
  %v699 = vpop.f32.mrf.mxu0
  %v700 = vpop.f32.mrf.mxu0
  %v701 = vadd.f32 0.0, %v700
  %v702 = vpop.f32.mrf.mxu0
  %703 = vmatprep.mubr.bf16.mxu0 0
  %704 = vmatmul.mubr.bf16.gmra.mxu0 %v661
  %v705 = vpop.f32.mrf.mxu0
  %v706 = vadd.f32 0.0, %v705
  %v707 = vpop.f32.mrf.mxu0
  %v708 = vpop.f32.mrf.mxu0
  %v709 = vadd.f32 0.0, %v708
  %v710 = vpop.f32.mrf.mxu0
  %711 = vdwg.mxu0
  %712 = vset.pattern.permute.xlu0 3
  %713 = vperm.xlu0 %712, %v173
  %v714 = vpop.permute.xlu0 %713
  %716 = vset.pattern.permute.xlu0 3
  %717 = vperm.xlu0 %716, %v178
  %v718 = vpop.permute.xlu0 %717
  %720 = vset.pattern.permute.xlu0 3
  %721 = vperm.xlu0 %720, %v183
  %v722 = vpop.permute.xlu0 %721
  %724 = vset.pattern.permute.xlu0 3
  %725 = vperm.xlu0 %724, %v188
  %v726 = vpop.permute.xlu0 %725
  %v728 = vlaneseq
  %v729 = vshrl.u32 %v728, 7
  %v730 = vsub.s32 3, %v729
  %v731 = vrot.slane %v262, %v730
  %v732 = vadd.f32 %v714, %v731
  %v733 = vadd.f32 %v718, %v731
  %v734 = vadd.f32 %v722, %v731
  %v735 = vadd.f32 %v726, %v731
  %vm736 = vcmp.gt.f32.partialorder %v732, 0.0
  %vm737 = vcmp.gt.f32.partialorder %v733, 0.0
  %vm738 = vcmp.gt.f32.partialorder %v734, 0.0
  %vm739 = vcmp.gt.f32.partialorder %v735, 0.0
  %v740 = vmul.f32 %v732, 0.2
  %v741 = vmul.f32 %v733, 0.2
  %v742 = vmul.f32 %v734, 0.2
  %v743 = vmul.f32 %v735, 0.2
  %v744 = vsel %vm736, %v732, %v740
  %v745 = vsel %vm737, %v733, %v741
  %v746 = vsel %vm738, %v734, %v742
  %v747 = vsel %vm739, %v735, %v743
  %v748 = vadd.f32 %v744, %v265
  %v749 = vadd.f32 %v745, %v266
  %v750 = vadd.f32 %v746, %v267
  %v751 = vadd.f32 %v747, %v268
  %v752 = vsel %vm93, %v748, -inf
  %753 = vmax.xlane.f32.xlu0 %v752
  %v754 = vpop.xlane.xlu0 %753
  %v755 = vsel %vm93, %v749, -inf
  %756 = vmax.xlane.f32.xlu0 %v755
  %v757 = vpop.xlane.xlu0 %756
  %v758 = vsel %vm93, %v750, -inf
  %759 = vmax.xlane.f32.xlu0 %v758
  %v760 = vpop.xlane.xlu0 %759
  %v761 = vsel %vm93, %v751, -inf
  %762 = vmax.xlane.f32.xlu0 %v761
  %v763 = vpop.xlane.xlu0 %762
  %v764 = vsub.f32 %v748, %v754
  %v765 = vsub.f32 %v749, %v757
  %v766 = vsub.f32 %v750, %v760
  %v767 = vsub.f32 %v751, %v763
  %v768 = vmul.f32 %v764, 1.442695
  %v769 = vpow.pop %v768
  %v770 = vmul.f32 %v765, 1.442695
  %v771 = vpow.pop %v770
  %v772 = vmul.f32 %v766, 1.442695
  %v773 = vpow.pop %v772
  %v774 = vmul.f32 %v767, 1.442695
  %v775 = vpow.pop %v774
  %v776 = vsel %vm93, %v769, 0.0
  %777 = vadd.xlane.f32.xlu0 %v776
  %v778 = vpop.xlane.xlu0 %777
  %v779 = vsel %vm93, %v771, 0.0
  %780 = vadd.xlane.f32.xlu0 %v779
  %v781 = vpop.xlane.xlu0 %780
  %v782 = vsel %vm93, %v773, 0.0
  %783 = vadd.xlane.f32.xlu0 %v782
  %v784 = vpop.xlane.xlu0 %783
  %v785 = vsel %vm93, %v775, 0.0
  %786 = vadd.xlane.f32.xlu0 %v785
  %v787 = vpop.xlane.xlu0 %786
  %v788 = vrcp.pop %v778
  %v789 = vrcp.pop %v781
  %v790 = vrcp.pop %v784
  %v791 = vrcp.pop %v787
  %v792 = vmul.f32 %v769, %v788
  %v793 = vmul.f32 %v771, %v789
  %v794 = vmul.f32 %v773, %v790
  %v795 = vmul.f32 %v775, %v791
  %v796 = vpack.c.bf16 %v793, %v792
  %v797 = vpack.c.bf16 %v795, %v794
  %798 = vrot.lane.b32.xlu0 %v359, 104
  %v799 = vpop.permute.xlu0 %798
  %800 = vrot.lane.b32.xlu0 %v360, 104
  %v801 = vpop.permute.xlu0 %800
  %v805 = vsel %vm93, %v796, 0
  %v808 = vsel %vm93, %v797, 0
  %810 = vmatprep.subr.bf16.mxu0 0
  %811 = vmatpush1.bf16.msra.mxu0 0
  %812 = vmatprep.subr.bf16.mxu0 0
  %813 = vmatpush1.bf16.msra.mxu0 0
  %814 = vmatprep.subr.bf16.mxu0 0
  %815 = vmatpush1.bf16.msra.mxu0 0
  %816 = vmatprep.subr.bf16.mxu0 0
  %817 = vmatpush1.bf16.msra.mxu0 0
  %818 = vmatprep.subr.bf16.mxu0 0
  %819 = vmatpush1.bf16.msra.mxu0 0
  %820 = vmatprep.subr.bf16.mxu0 0
  %821 = vmatpush1.bf16.msra.mxu0 0
  %822 = vmatprep.subr.bf16.mxu0 0
  %823 = vmatpush1.bf16.msra.mxu0 %v801
  %824 = vmatprep.subr.bf16.mxu0 0
  %825 = vmatpush1.bf16.msra.mxu0 %v799
  %826 = vmatprep.subr.bf16.mxu0 0
  %827 = vmatpush2.bf16.msra.mxu0 0
  %828 = vmatprep.subr.bf16.mxu0 0
  %829 = vmatpush2.bf16.msra.mxu0 0
  %830 = vmatprep.subr.bf16.mxu0 0
  %831 = vmatpush2.bf16.msra.mxu0 0
  %832 = vmatprep.subr.bf16.mxu0 0
  %833 = vmatpush2.bf16.msra.mxu0 0
  %834 = vmatprep.subr.bf16.mxu0 0
  %835 = vmatpush2.bf16.msra.mxu0 0
  %836 = vmatprep.subr.bf16.mxu0 0
  %837 = vmatpush2.bf16.msra.mxu0 0
  %838 = vmatprep.subr.bf16.mxu0 0
  %839 = vmatpush2.bf16.msra.mxu0 0
  %840 = vmatprep.subr.bf16.mxu0 0
  %841 = vmatpush2.bf16.msra.mxu0 0
  %842 = vmatprep.mubr.bf16.mxu0 0
  %843 = vmatmul.mubr.bf16.gmra.mxu0 %v805
  %v844 = vpop.f32.mrf.mxu0
  %v845 = vadd.f32 0.0, %v844
  %v846 = vpop.f32.mrf.mxu0
  %v847 = vpop.f32.mrf.mxu0
  %v848 = vadd.f32 0.0, %v847
  %v849 = vpop.f32.mrf.mxu0
  %850 = vmatprep.mubr.bf16.mxu0 0
  %851 = vmatmul.mubr.bf16.gmra.mxu0 %v808
  %v852 = vpop.f32.mrf.mxu0
  %v853 = vadd.f32 0.0, %v852
  %v854 = vpop.f32.mrf.mxu0
  %v855 = vpop.f32.mrf.mxu0
  %v856 = vadd.f32 0.0, %v855
  %v857 = vpop.f32.mrf.mxu0
  %858 = vdwg.mxu0
  %863 = vrot.lane.b32.xlu0 %v551, 8
  %v864 = vpop.permute.xlu0 %863
  %865 = vrot.lane.b32.xlu0 %v554, 8
  %v866 = vpop.permute.xlu0 %865
  %867 = vrot.lane.b32.xlu0 %v559, 8
  %v868 = vpop.permute.xlu0 %867
  %869 = vrot.lane.b32.xlu0 %v562, 8
  %v870 = vpop.permute.xlu0 %869
  %879 = vrot.lane.b32.xlu0 %v698, 16
  %v880 = vpop.permute.xlu0 %879
  %881 = vrot.lane.b32.xlu0 %v701, 16
  %v882 = vpop.permute.xlu0 %881
  %883 = vrot.lane.b32.xlu0 %v706, 16
  %v884 = vpop.permute.xlu0 %883
  %885 = vrot.lane.b32.xlu0 %v709, 16
  %v886 = vpop.permute.xlu0 %885
  %895 = vrot.lane.b32.xlu0 %v845, 24
  %v896 = vpop.permute.xlu0 %895
  %897 = vrot.lane.b32.xlu0 %v848, 24
  %v898 = vpop.permute.xlu0 %897
  %899 = vrot.lane.b32.xlu0 %v853, 24
  %v900 = vpop.permute.xlu0 %899
  %901 = vrot.lane.b32.xlu0 %v856, 24
  %v902 = vpop.permute.xlu0 %901
  %vm907 = vcmask 64512
  %v908 = vsel %vm907, %v402, %v864
  %v909 = vsel %vm907, %v405, %v866
  %v910 = vsel %vm907, %v410, %v868
  %v911 = vsel %vm907, %v413, %v870
  %v912 = vsel %vm33, %v908, %v880
  %v913 = vsel %vm33, %v909, %v882
  %v914 = vsel %vm33, %v910, %v884
  %v915 = vsel %vm33, %v911, %v886
  %vm916 = vcmask 195584
  %v917 = vsel %vm916, %v912, %v896
  %v918 = vsel %vm916, %v913, %v898
  %v919 = vsel %vm916, %v914, %v900
  %v920 = vsel %vm916, %v915, %v902
  %v921 = vld [vmem:[%s4] sm:$0x1]
  %v923 = vlaneseq
  %v924 = vshrl.u32 %v923, 7
  %v925 = vsub.s32 0, %v924
  %v926 = vrot.slane %v921, %v925
  %v928 = vadd.f32 %v917, %v926
  %v929 = vadd.f32 %v918, %v926
  %v930 = vadd.f32 %v919, %v926
  %v931 = vadd.f32 %v920, %v926
  %vm932 = vcmp.gt.f32.partialorder %v928, 0.0
  %vm933 = vcmp.gt.f32.partialorder %v929, 0.0
  %vm934 = vcmp.gt.f32.partialorder %v930, 0.0
  %vm935 = vcmp.gt.f32.partialorder %v931, 0.0
  %v936 = vmin.f32 %v928, 0.0
  %v937 = vmin.f32 %v929, 0.0
  %v938 = vmin.f32 %v930, 0.0
  %v939 = vmin.f32 %v931, 0.0
  %v940 = vmul.f32 %v936, 1.442695
  %v941 = vpow.pop %v940
  %v942 = vmul.f32 %v937, 1.442695
  %v943 = vpow.pop %v942
  %v944 = vmul.f32 %v938, 1.442695
  %v945 = vpow.pop %v944
  %v946 = vmul.f32 %v939, 1.442695
  %v947 = vpow.pop %v946
  %v948 = vsub.f32 %v941, 1.0
  %v949 = vsub.f32 %v943, 1.0
  %v950 = vsub.f32 %v945, 1.0
  %v951 = vsub.f32 %v947, 1.0
  %v952 = vsel %vm932, %v928, %v948
  %v953 = vsel %vm933, %v929, %v949
  %v954 = vsel %vm934, %v930, %v950
  %v955 = vsel %vm935, %v931, %v951
  %956 = vst.msk [vmem:[%s6] sm:$0xff] %vm93, %v952
  %957 = vst.msk [vmem:[%s6 + $0x8] sm:$0xff] %vm93, %v953
  %958 = vst.msk [vmem:[%s6 + $0x10] sm:$0xff] %vm93, %v954
  %959 = vst.msk [vmem:[%s6 + $0x18] sm:$0xff] %vm93, %v955
  // Predicated region
  $region26: #{gat_forward.2} parent=0 // pred_check
    _
  $region27: #{gat_forward.2} parent=0 // pred_check_branch
    %961 = sbr.rel (0) target = $region29
  $region28: #{gat_forward.2} parent=0 // pred_region
    _
  $region29: #{gat_forward.2} parent=0 // pred_fallthru
    _
  // Predicated region
  $region30: #{gat_forward.2} parent=0 // pred_check
    _
  $region31: #{gat_forward.2} parent=0 // pred_check_branch
    %963 = sbr.rel (0) target = $region33
  $region32: #{gat_forward.2} parent=0 // pred_region
    _
  $region33: #{gat_forward.2} parent=0 // pred_fallthru
    _

</llo_original>
